<compile_context>
chip_gen: v5e
topology: v5e:2x2
jax: 0.10.0
libtpu: 0.0.40
codegen_flags: <defaults>
</compile_context>

<pallas_src>
import jax
import jax.numpy as jnp
import numpy as np
from jax import lax
from jax.experimental import pallas as pl
from jax.experimental.pallas import tpu as pltpu  # noqa: F401  (TPU-specific tuning hooks)

# ---- Mini BertConfig (scaled down, semantics preserved) -------------------------------
BATCH = 2
SEQ = 8
VOCAB = 50
MAX_POS = 16
TYPE_VOCAB = 2
HIDDEN = 32
NUM_HEADS = 4
HEAD_DIM = HIDDEN // NUM_HEADS
INTERMEDIATE = 64
NUM_LAYERS = 2
NUM_CLASSES = 2
LN_EPS = 1e-12

BS = BATCH * SEQ          # rows of the flattened activation slab
VOCAB_PAD = 64            # word table padded to a sublane-friendly row count


def _ceil8(n):
    return ((n + 7) // 8) * 8


# ---- Packed-parameter row layouts (all static Python ints) ----------------------------
# p32 : H(=32)-lane-wide slab
_OFF_WORD = 0                                   # (VOCAB_PAD, H) padded word embedding table
_OFF_PT = _OFF_WORD + VOCAB_PAD                 # (BS, H) pos+type embeddings, pre-tiled per batch
_OFF_MISC = _OFF_PT + BS                        # rows: emb_ln_g, emb_ln_b, pooler_b
_OFF_POOLW = _ceil8(_OFF_MISC + 3)              # (H, H) pooler weight
_OFF_WO = _OFF_POOLW + HIDDEN                   # L x (H, H) attention output projections
_OFF_WF = _OFF_WO + NUM_LAYERS * HIDDEN         # L x (I, H) FFN down projections
_OFF_VH = _OFF_WF + NUM_LAYERS * INTERMEDIATE   # L x 6 rows: [bo, ln1_g, ln1_b, bf, ln2_g, ln2_b]
_ROWS32 = _ceil8(_OFF_VH + NUM_LAYERS * 6)

# p96 : 3H-lane-wide slab (fused QKV)
_OFF_WQKV = 0                                   # L x (H, 3H)  [Q | K | V], Q pre-scaled
_OFF_BQKV = NUM_LAYERS * HIDDEN                 # L x (1, 3H)
_ROWS96 = _ceil8(_OFF_BQKV + NUM_LAYERS)

# p64 : I-lane-wide slab (FFN up projection)
_OFF_WI = 0                                     # L x (H, I)
_OFF_BI = NUM_LAYERS * HIDDEN                   # L x (1, I)
_ROWS64 = _ceil8(_OFF_BI + NUM_LAYERS)

# p2 : NUM_CLASSES-lane-wide slab (classifier)
_OFF_FCW = 0                                    # (H, NC)
_OFF_FCB = HIDDEN                               # (1, NC)
_ROWS2 = _ceil8(_OFF_FCB + 1)


# ---- Math helpers ----------------------------------------------------------------------
def _layer_norm(x, gamma, beta):
    mu = jnp.mean(x, axis=-1, keepdims=True)
    var = jnp.mean(jnp.square(x - mu), axis=-1, keepdims=True)
    return (x - mu) * lax.rsqrt(var + LN_EPS) * gamma + beta


def _gelu_ref(x):
    # exact (erf-based) GELU — used only by the pure-JAX reference
    return 0.5 * x * (1.0 + lax.erf(x / jnp.sqrt(jnp.float32(2.0))))


def _gelu_kernel(x):
    # exact-GELU semantics; erf via Abramowitz–Stegun 7.1.26 (|err| < 1.5e-7),
    # built only from exp / mul / add / select so it lowers cleanly in Mosaic.
    z = x * jnp.float32(0.7071067811865476)
    sgn = jnp.where(z >= 0, jnp.float32(1.0), jnp.float32(-1.0))
    az = jnp.abs(z)
    t = 1.0 / (1.0 + jnp.float32(0.3275911) * az)
    poly = ((((jnp.float32(1.061405429) * t + jnp.float32(-1.453152027)) * t
              + jnp.float32(1.421413741)) * t + jnp.float32(-0.284496736)) * t
            + jnp.float32(0.254829592)) * t
    erf_z = sgn * (1.0 - poly * jnp.exp(-az * az))
    return 0.5 * x * (1.0 + erf_z)


# ---- Single fused kernel ---------------------------------------------------------------
def fused_forward_kernel(ids_ref, amask_ref, cross_ref,
                         p32_ref, p96_ref, p64_ref, p2_ref, o_ref):
    """Whole mini-BERT forward (flattened batch packed into sublanes) in one invocation.

    ids_ref   : (BS, 1)  int32   flattened input ids
    amask_ref : (1, BS)  int32   flattened attention mask (1 = keep, 0 = pad)
    cross_ref : (BS, BS) f32     static block-diagonal mask (0 same batch, -1e9 cross batch)
    p32/p96/p64/p2 : packed parameter slabs (see _OFF_* layout constants)
    """
    f32 = jnp.float32

    # ---- Embeddings: one-hot gather on the MXU + static pos/type table -----------------
    iota = lax.broadcasted_iota(jnp.int32, (BS, VOCAB_PAD), 1)
    onehot = jnp.where(iota == ids_ref[...], f32(1.0), f32(0.0))          # (BS, VOCAB_PAD)
    word_tbl = p32_ref[_OFF_WORD:_OFF_WORD + VOCAB_PAD, :]                 # (VOCAB_PAD, H)
    emb = (jnp.dot(onehot, word_tbl, preferred_element_type=f32)
           + p32_ref[_OFF_PT:_OFF_PT + BS, :])                             # (BS, H)
    h = _layer_norm(emb,
                    p32_ref[_OFF_MISC:_OFF_MISC + 1, :],
                    p32_ref[_OFF_MISC + 1:_OFF_MISC + 2, :])

    # ---- Combined additive attention mask: key padding + cross-batch block mask --------
    keypad = (1.0 - amask_ref[...].astype(f32)) * f32(-10000.0)            # (1, BS)
    mask = cross_ref[...] + keypad                                         # (BS, BS)

    # ---- Encoder layers (static unroll, L=2) --------------------------------------------
    for l in range(NUM_LAYERS):
        wqkv = p96_ref[_OFF_WQKV + l * HIDDEN:_OFF_WQKV + (l + 1) * HIDDEN, :]   # (H, 3H)
        bqkv = p96_ref[_OFF_BQKV + l:_OFF_BQKV + l + 1, :]                       # (1, 3H)
        qkv = jnp.dot(h, wqkv, preferred_element_type=f32) + bqkv                # (BS, 3H)

        ctx_heads = []
        for n in range(NUM_HEADS):                                               # static, 4 iters
            q = qkv[:, n * HEAD_DIM:(n + 1) * HEAD_DIM]                          # (BS, HD)
            k = qkv[:, HIDDEN + n * HEAD_DIM:HIDDEN + (n + 1) * HEAD_DIM]
            v = qkv[:, 2 * HIDDEN + n * HEAD_DIM:2 * HIDDEN + (n + 1) * HEAD_DIM]
            # scores over all B*S keys; cross-batch entries are masked to ~-inf
            s = lax.dot_general(q, k, (((1,), (1,)), ((), ())),
                                preferred_element_type=f32) + mask               # (BS, BS)
            s = s - jnp.max(s, axis=-1, keepdims=True)
            p = jnp.exp(s)
            p = p * pl.reciprocal(jnp.sum(p, axis=-1, keepdims=True), approx=True)
            ctx_heads.append(jnp.dot(p, v, preferred_element_type=f32))          # (BS, HD)
        ctx = jnp.concatenate(ctx_heads, axis=1)                                 # (BS, H)

        wo = p32_ref[_OFF_WO + l * HIDDEN:_OFF_WO + (l + 1) * HIDDEN, :]         # (H, H)
        vh = p32_ref[_OFF_VH + l * 6:_OFF_VH + l * 6 + 6, :]                     # (6, H)
        attn = jnp.dot(ctx, wo, preferred_element_type=f32) + vh[0:1, :]
        h1 = _layer_norm(attn + h, vh[1:2, :], vh[2:3, :])

        wi = p64_ref[_OFF_WI + l * HIDDEN:_OFF_WI + (l + 1) * HIDDEN, :]         # (H, I)
        bi = p64_ref[_OFF_BI + l:_OFF_BI + l + 1, :]                             # (1, I)
        wf = p32_ref[_OFF_WF + l * INTERMEDIATE:_OFF_WF + (l + 1) * INTERMEDIATE, :]  # (I, H)
        inter = _gelu_kernel(jnp.dot(h1, wi, preferred_element_type=f32) + bi)
        ffn = jnp.dot(inter, wf, preferred_element_type=f32) + vh[3:4, :]
        h = _layer_norm(ffn + h1, vh[4:5, :], vh[5:6, :])

    # ---- Pooler on the [CLS] row of each batch element, then classification head -------
    cls = jnp.concatenate([h[b * SEQ:b * SEQ + 1, :] for b in range(BATCH)], axis=0)   # (B, H)
    wp = p32_ref[_OFF_POOLW:_OFF_POOLW + HIDDEN, :]
    pb = p32_ref[_OFF_MISC + 2:_OFF_MISC + 3, :]
    pooled = jnp.tanh(jnp.dot(cls, wp, preferred_element_type=f32) + pb)
    wc = p2_ref[_OFF_FCW:_OFF_FCW + HIDDEN, :]
    cb = p2_ref[_OFF_FCB:_OFF_FCB + 1, :]
    o_ref[...] = (jnp.dot(pooled, wc, preferred_element_type=f32) + cb).astype(o_ref.dtype)


# ---- Parameters ------------------------------------------------------------------------
def init_params(key):
    keys = iter(jax.random.split(key, 8 + NUM_LAYERS * 8))

    def nrm(shape):
        return jax.random.normal(next(keys), shape, jnp.float32) * 0.02

    params = {
        "word_emb": nrm((VOCAB, HIDDEN)),
        "pos_emb": nrm((MAX_POS, HIDDEN)),
        "type_emb": nrm((TYPE_VOCAB, HIDDEN)),
        "emb_ln_g": jnp.ones((1, HIDDEN), jnp.float32),
        "emb_ln_b": jnp.zeros((1, HIDDEN), jnp.float32),
        "pooler_w": nrm((HIDDEN, HIDDEN)),
        "pooler_b": jnp.zeros((1, HIDDEN), jnp.float32),
        "fc_w": nrm((HIDDEN, NUM_CLASSES)),
        "fc_b": jnp.zeros((1, NUM_CLASSES), jnp.float32),
        "layers": [],
    }
    for _ in range(NUM_LAYERS):
        layer = (
            nrm((HIDDEN, HIDDEN)), jnp.zeros((1, HIDDEN), jnp.float32),                # Wq, bq
            nrm((HIDDEN, HIDDEN)), jnp.zeros((1, HIDDEN), jnp.float32),                # Wk, bk
            nrm((HIDDEN, HIDDEN)), jnp.zeros((1, HIDDEN), jnp.float32),                # Wv, bv
            nrm((HIDDEN, HIDDEN)), jnp.zeros((1, HIDDEN), jnp.float32),                # Wo, bo
            jnp.ones((1, HIDDEN), jnp.float32), jnp.zeros((1, HIDDEN), jnp.float32),   # LN1
            nrm((HIDDEN, INTERMEDIATE)), jnp.zeros((1, INTERMEDIATE), jnp.float32),    # Wi, bi
            nrm((INTERMEDIATE, HIDDEN)), jnp.zeros((1, HIDDEN), jnp.float32),          # Wf, bf
            jnp.ones((1, HIDDEN), jnp.float32), jnp.zeros((1, HIDDEN), jnp.float32),   # LN2
        )
        params["layers"].append(layer)
    return params


def prepare_fused_params(params):
    """One-time re-layout of all weights into 4 packed VMEM slabs (hoisted out of forward)."""
    scale = jnp.float32(1.0 / np.sqrt(HEAD_DIM))

    def pad_rows(x, rows):
        return jnp.zeros((rows, x.shape[1]), jnp.float32).at[: x.shape[0]].set(x)

    # --- 32-lane slab pieces ---
    word_pad = pad_rows(params["word_emb"], VOCAB_PAD)
    pos_type = params["pos_emb"][:SEQ] + params["type_emb"][0][None, :]          # (S, H)
    pt_tiled = jnp.tile(pos_type, (BATCH, 1))                                    # (BS, H)
    misc = jnp.concatenate(
        [params["emb_ln_g"], params["emb_ln_b"], params["pooler_b"]], axis=0)    # (3, H)

    wqkv_rows, bqkv_rows, wi_rows, bi_rows = [], [], [], []
    wo_rows, wf_rows, vh_rows = [], [], []
    for (wq, bq, wk, bk, wv, bv, wo, bo, g1, be1,
         wi, bi, wf, bf, g2, be2) in params["layers"]:
        # fold 1/sqrt(head_dim) into the Q third of the fused weight AND bias (once each)
        wqkv_rows.append(jnp.concatenate([wq * scale, wk, wv], axis=1))          # (H, 3H)
        bqkv_rows.append(jnp.concatenate([bq * scale, bk, bv], axis=1))          # (1, 3H)
        wo_rows.append(wo)                                                       # (H, H)
        wf_rows.append(wf)                                                       # (I, H)
        vh_rows.append(jnp.concatenate([bo, g1, be1, bf, g2, be2], axis=0))      # (6, H)
        wi_rows.append(wi)                                                       # (H, I)
        bi_rows.append(bi)                                                       # (1, I)

    p32 = pad_rows(jnp.concatenate(
        [word_pad, pt_tiled, pad_rows(misc, _OFF_POOLW - _OFF_MISC),
         params["pooler_w"]] + wo_rows + wf_rows + vh_rows, axis=0), _ROWS32)
    p96 = pad_rows(jnp.concatenate(wqkv_rows + bqkv_rows, axis=0), _ROWS96)
    p64 = pad_rows(jnp.concatenate(wi_rows + bi_rows, axis=0), _ROWS64)
    p2 = pad_rows(jnp.concatenate([params["fc_w"], params["fc_b"]], axis=0), _ROWS2)

    # static block-diagonal mask: 0 within a batch element, -1e9 across batch elements
    bidx = np.repeat(np.arange(BATCH), SEQ)
    cross = jnp.asarray(np.where(bidx[:, None] == bidx[None, :], 0.0, -1e9),
                        dtype=jnp.float32)
    return {"p32": p32, "p96": p96, "p64": p64, "p2": p2, "cross": cross}


# ---- Forward passes --------------------------------------------------------------------
@jax.jit
def transformer_forward(fused, input_ids, attention_mask):
    """Pallas-backed forward: BertModel(...)[1] -> fc -> logits. One fused kernel call."""
    ids = input_ids.reshape(BS, 1).astype(jnp.int32)
    amask = attention_mask.reshape(1, BS).astype(jnp.int32)
    return pl.pallas_call(
        fused_forward_kernel,
        out_shape=jax.ShapeDtypeStruct((BATCH, NUM_CLASSES), jnp.float32),
        # no grid: single invocation, all packed params (~90 KB) live whole in VMEM
    )(ids, amask, fused["cross"], fused["p32"], fused["p96"], fused["p64"], fused["p2"])


def reference_forward(params, input_ids, attention_mask):
    """Pure-JAX reference with identical semantics, for validation."""
    B, S = input_ids.shape
    we = params["word_emb"][input_ids]
    pe = params["pos_emb"][:S][None, :, :]
    te = params["type_emb"][0][None, None, :]
    h = _layer_norm(we + pe + te, params["emb_ln_g"], params["emb_ln_b"])
    mask_add = (1.0 - attention_mask.astype(jnp.float32))[:, None, :] * -10000.0

    for (wq, bq, wk, bk, wv, bv, wo, bo, g1, be1, wi, bi, wf, bf, g2, be2) in params["layers"]:
        q = h @ wq + bq
        k = h @ wk + bk
        v = h @ wv + bv

        def split(t):
            return t.reshape(B, S, NUM_HEADS, HEAD_DIM).transpose(0, 2, 1, 3)

        qh, kh, vh = split(q), split(k), split(v)
        s = jnp.einsum("bhqd,bhkd->bhqk", qh, kh) / jnp.sqrt(jnp.float32(HEAD_DIM))
        s = s + mask_add[:, :, None, :]
        p = jax.nn.softmax(s, axis=-1)
        ctx = jnp.einsum("bhqk,bhkd->bhqd", p, vh).transpose(0, 2, 1, 3).reshape(B, S, HIDDEN)
        h1 = _layer_norm(ctx @ wo + bo + h, g1, be1)
        ffn = _gelu_ref(h1 @ wi + bi) @ wf + bf
        h = _layer_norm(ffn + h1, g2, be2)

    pooled = jnp.tanh(h[:, 0, :] @ params["pooler_w"] + params["pooler_b"])
    return pooled @ params["fc_w"] + params["fc_b"]


# ---- Main ------------------------------------------------------------------------------
if __name__ == "__main__":
    key = jax.random.PRNGKey(0)
    pkey, ikey = jax.random.split(key)
    params = init_params(pkey)
    fused = prepare_fused_params(params)   # one-time weight layout (hoisted out of forward)

    input_ids = jax.random.randint(ikey, (BATCH, SEQ), 0, VOCAB, dtype=jnp.int32)
    attention_mask = jnp.ones((BATCH, SEQ), jnp.int32).at[1, 6:].set(0)  # pad last 2 of batch 1

    logits = transformer_forward(fused, input_ids, attention_mask)
    jax.block_until_ready(logits)

    assert logits.shape == (BATCH, NUM_CLASSES)
    ref = reference_forward(params, input_ids, attention_mask)
    # tolerance loosened vs exact math: softmax uses approximate reciprocal (EUP path).
    np.testing.assert_allclose(np.asarray(logits), np.asarray(ref), atol=1e-3, rtol=1e-2)

    print("KERNEL_OK")
</pallas_src>

<mosaic_0001>
module attributes {stable_mosaic.version = 11 : i64} {
  func.func @fused_forward_kernel(%arg0: memref<16x1xi32, #tpu.memory_space<vmem>>, %arg1: memref<1x16xi32, #tpu.memory_space<vmem>>, %arg2: memref<16x16xf32, #tpu.memory_space<vmem>>, %arg3: memref<328x32xf32, #tpu.memory_space<vmem>>, %arg4: memref<72x96xf32, #tpu.memory_space<vmem>>, %arg5: memref<72x64xf32, #tpu.memory_space<vmem>>, %arg6: memref<40x2xf32, #tpu.memory_space<vmem>>, %arg7: memref<2x2xf32, #tpu.memory_space<vmem>>) attributes {dimension_semantics = [], scalar_prefetch = 0 : i64, scratch_operands = 0 : i64, tpu.core_type = #tpu.core_type<tc>} {
    %0 = tpu.iota {dimensions = array<i32: 1>} : vector<16x64xi32>
    %c0 = arith.constant 0 : index
    %c0_0 = arith.constant 0 : index
    %1 = vector.load %arg0[%c0, %c0_0] : memref<16x1xi32, #tpu.memory_space<vmem>>, vector<16x1xi32>
    %2 = vector.broadcast %1 : vector<16x1xi32> to vector<16x64xi32>
    %3 = arith.cmpi eq, %0, %2 : vector<16x64xi32>
    %cst = arith.constant 1.000000e+00 : f32
    %cst_1 = arith.constant 0.000000e+00 : f32
    %4 = vector.broadcast %cst : f32 to vector<16x64xf32>
    %5 = vector.broadcast %cst_1 : f32 to vector<16x64xf32>
    %6 = arith.select %3, %4, %5 : vector<16x64xi1>, vector<16x64xf32>
    %c0_2 = arith.constant 0 : index
    %c0_3 = arith.constant 0 : index
    %7 = vector.load %arg3[%c0_2, %c0_3] : memref<328x32xf32, #tpu.memory_space<vmem>>, vector<64x32xf32>
    %cst_4 = arith.constant dense<0.000000e+00> : vector<16x32xf32>
    %8 = tpu.matmul %6, %7, %cst_4 {dimension_numbers = #tpu.dot_dimension_numbers<[1], [0], [0], [1], [0, 0, 1, 1], [], []>} : vector<16x64xf32>, vector<64x32xf32>, vector<16x32xf32> -> vector<16x32xf32>
    %c64 = arith.constant 64 : index
    %c0_5 = arith.constant 0 : index
    %9 = vector.load %arg3[%c64, %c0_5] : memref<328x32xf32, #tpu.memory_space<vmem>>, vector<16x32xf32>
    %10 = arith.addf %8, %9 : vector<16x32xf32>
    %c80 = arith.constant 80 : index
    %c0_6 = arith.constant 0 : index
    %11 = vector.load %arg3[%c80, %c0_6] : memref<328x32xf32, #tpu.memory_space<vmem>>, vector<1x32xf32>
    %c81 = arith.constant 81 : index
    %c0_7 = arith.constant 0 : index
    %12 = vector.load %arg3[%c81, %c0_7] : memref<328x32xf32, #tpu.memory_space<vmem>>, vector<1x32xf32>
    %cst_8 = arith.constant dense<0.000000e+00> : vector<16xf32>
    %13 = vector.multi_reduction <add>, %10, %cst_8 [1] : vector<16x32xf32> to vector<16xf32>
    %14 = vector.shape_cast %13 : vector<16xf32> to vector<16x1xf32>
    %cst_9 = arith.constant 3.200000e+01 : f32
    %15 = vector.broadcast %cst_9 : f32 to vector<16x1xf32>
    %16 = arith.divf %14, %15 : vector<16x1xf32>
    %17 = vector.broadcast %16 : vector<16x1xf32> to vector<16x32xf32>
    %18 = arith.subf %10, %17 : vector<16x32xf32>
    %19 = arith.mulf %18, %18 : vector<16x32xf32>
    %cst_10 = arith.constant dense<0.000000e+00> : vector<16xf32>
    %20 = vector.multi_reduction <add>, %19, %cst_10 [1] : vector<16x32xf32> to vector<16xf32>
    %21 = vector.shape_cast %20 : vector<16xf32> to vector<16x1xf32>
    %cst_11 = arith.constant 3.200000e+01 : f32
    %22 = vector.broadcast %cst_11 : f32 to vector<16x1xf32>
    %23 = arith.divf %21, %22 : vector<16x1xf32>
    %24 = vector.broadcast %16 : vector<16x1xf32> to vector<16x32xf32>
    %25 = arith.subf %10, %24 : vector<16x32xf32>
    %cst_12 = arith.constant 9.99999996E-13 : f32
    %26 = vector.broadcast %cst_12 : f32 to vector<16x1xf32>
    %27 = arith.addf %23, %26 : vector<16x1xf32>
    %28 = math.rsqrt %27 : vector<16x1xf32>
    %29 = vector.broadcast %28 : vector<16x1xf32> to vector<16x32xf32>
    %30 = arith.mulf %25, %29 : vector<16x32xf32>
    %31 = vector.broadcast %11 : vector<1x32xf32> to vector<16x32xf32>
    %32 = arith.mulf %30, %31 : vector<16x32xf32>
    %33 = vector.broadcast %12 : vector<1x32xf32> to vector<16x32xf32>
    %34 = arith.addf %32, %33 : vector<16x32xf32>
    %c0_13 = arith.constant 0 : index
    %c0_14 = arith.constant 0 : index
    %35 = vector.load %arg1[%c0_13, %c0_14] : memref<1x16xi32, #tpu.memory_space<vmem>>, vector<1x16xi32>
    %36 = arith.sitofp %35 : vector<1x16xi32> to vector<1x16xf32>
    %cst_15 = arith.constant 1.000000e+00 : f32
    %37 = vector.broadcast %cst_15 : f32 to vector<1x16xf32>
    %38 = arith.subf %37, %36 : vector<1x16xf32>
    %cst_16 = arith.constant -1.000000e+04 : f32
    %39 = vector.broadcast %cst_16 : f32 to vector<1x16xf32>
    %40 = arith.mulf %38, %39 : vector<1x16xf32>
    %c0_17 = arith.constant 0 : index
    %c0_18 = arith.constant 0 : index
    %41 = vector.load %arg2[%c0_17, %c0_18] : memref<16x16xf32, #tpu.memory_space<vmem>>, vector<16x16xf32>
    %42 = vector.broadcast %40 : vector<1x16xf32> to vector<16x16xf32>
    %43 = arith.addf %41, %42 : vector<16x16xf32>
    %c0_19 = arith.constant 0 : index
    %c0_20 = arith.constant 0 : index
    %44 = vector.load %arg4[%c0_19, %c0_20] : memref<72x96xf32, #tpu.memory_space<vmem>>, vector<32x96xf32>
    %c64_21 = arith.constant 64 : index
    %c0_22 = arith.constant 0 : index
    %45 = vector.load %arg4[%c64_21, %c0_22] : memref<72x96xf32, #tpu.memory_space<vmem>>, vector<1x96xf32>
    %cst_23 = arith.constant dense<0.000000e+00> : vector<16x96xf32>
    %46 = tpu.matmul %34, %44, %cst_23 {dimension_numbers = #tpu.dot_dimension_numbers<[1], [0], [0], [1], [0, 0, 1, 1], [], []>} : vector<16x32xf32>, vector<32x96xf32>, vector<16x96xf32> -> vector<16x96xf32>
    %47 = vector.broadcast %45 : vector<1x96xf32> to vector<16x96xf32>
    %48 = arith.addf %46, %47 : vector<16x96xf32>
    %49 = vector.extract_strided_slice %48 {offsets = [0, 0], sizes = [16, 8], strides = [1, 1]} : vector<16x96xf32> to vector<16x8xf32>
    %50 = vector.extract_strided_slice %48 {offsets = [0, 32], sizes = [16, 8], strides = [1, 1]} : vector<16x96xf32> to vector<16x8xf32>
    %51 = vector.extract_strided_slice %48 {offsets = [0, 64], sizes = [16, 8], strides = [1, 1]} : vector<16x96xf32> to vector<16x8xf32>
    %cst_24 = arith.constant dense<0.000000e+00> : vector<16x16xf32>
    %52 = tpu.matmul %49, %50, %cst_24 {dimension_numbers = #tpu.dot_dimension_numbers<[1], [1], [0], [0], [0, 0, 1, 0], [], []>} : vector<16x8xf32>, vector<16x8xf32>, vector<16x16xf32> -> vector<16x16xf32>
    %53 = arith.addf %52, %43 : vector<16x16xf32>
    %cst_25 = arith.constant dense<0xFF800000> : vector<16xf32>
    %54 = vector.multi_reduction <maximumf>, %53, %cst_25 [1] : vector<16x16xf32> to vector<16xf32>
    %55 = vector.shape_cast %54 : vector<16xf32> to vector<16x1xf32>
    %56 = vector.broadcast %55 : vector<16x1xf32> to vector<16x16xf32>
    %57 = arith.subf %53, %56 : vector<16x16xf32>
    %58 = math.exp %57 : vector<16x16xf32>
    %cst_26 = arith.constant dense<0.000000e+00> : vector<16xf32>
    %59 = vector.multi_reduction <add>, %58, %cst_26 [1] : vector<16x16xf32> to vector<16xf32>
    %60 = vector.shape_cast %59 : vector<16xf32> to vector<16x1xf32>
    %61 = tpu.reciprocal %60 {approx = true} : vector<16x1xf32> -> vector<16x1xf32>
    %62 = vector.broadcast %61 : vector<16x1xf32> to vector<16x16xf32>
    %63 = arith.mulf %58, %62 : vector<16x16xf32>
    %cst_27 = arith.constant dense<0.000000e+00> : vector<16x8xf32>
    %64 = tpu.matmul %63, %51, %cst_27 {dimension_numbers = #tpu.dot_dimension_numbers<[1], [0], [0], [1], [0, 0, 1, 1], [], []>} : vector<16x16xf32>, vector<16x8xf32>, vector<16x8xf32> -> vector<16x8xf32>
    %65 = vector.extract_strided_slice %48 {offsets = [0, 8], sizes = [16, 8], strides = [1, 1]} : vector<16x96xf32> to vector<16x8xf32>
    %66 = vector.extract_strided_slice %48 {offsets = [0, 40], sizes = [16, 8], strides = [1, 1]} : vector<16x96xf32> to vector<16x8xf32>
    %67 = vector.extract_strided_slice %48 {offsets = [0, 72], sizes = [16, 8], strides = [1, 1]} : vector<16x96xf32> to vector<16x8xf32>
    %cst_28 = arith.constant dense<0.000000e+00> : vector<16x16xf32>
    %68 = tpu.matmul %65, %66, %cst_28 {dimension_numbers = #tpu.dot_dimension_numbers<[1], [1], [0], [0], [0, 0, 1, 0], [], []>} : vector<16x8xf32>, vector<16x8xf32>, vector<16x16xf32> -> vector<16x16xf32>
    %69 = arith.addf %68, %43 : vector<16x16xf32>
    %cst_29 = arith.constant dense<0xFF800000> : vector<16xf32>
    %70 = vector.multi_reduction <maximumf>, %69, %cst_29 [1] : vector<16x16xf32> to vector<16xf32>
    %71 = vector.shape_cast %70 : vector<16xf32> to vector<16x1xf32>
    %72 = vector.broadcast %71 : vector<16x1xf32> to vector<16x16xf32>
    %73 = arith.subf %69, %72 : vector<16x16xf32>
    %74 = math.exp %73 : vector<16x16xf32>
    %cst_30 = arith.constant dense<0.000000e+00> : vector<16xf32>
    %75 = vector.multi_reduction <add>, %74, %cst_30 [1] : vector<16x16xf32> to vector<16xf32>
    %76 = vector.shape_cast %75 : vector<16xf32> to vector<16x1xf32>
    %77 = tpu.reciprocal %76 {approx = true} : vector<16x1xf32> -> vector<16x1xf32>
    %78 = vector.broadcast %77 : vector<16x1xf32> to vector<16x16xf32>
    %79 = arith.mulf %74, %78 : vector<16x16xf32>
    %cst_31 = arith.constant dense<0.000000e+00> : vector<16x8xf32>
    %80 = tpu.matmul %79, %67, %cst_31 {dimension_numbers = #tpu.dot_dimension_numbers<[1], [0], [0], [1], [0, 0, 1, 1], [], []>} : vector<16x16xf32>, vector<16x8xf32>, vector<16x8xf32> -> vector<16x8xf32>
    %81 = vector.extract_strided_slice %48 {offsets = [0, 16], sizes = [16, 8], strides = [1, 1]} : vector<16x96xf32> to vector<16x8xf32>
    %82 = vector.extract_strided_slice %48 {offsets = [0, 48], sizes = [16, 8], strides = [1, 1]} : vector<16x96xf32> to vector<16x8xf32>
    %83 = vector.extract_strided_slice %48 {offsets = [0, 80], sizes = [16, 8], strides = [1, 1]} : vector<16x96xf32> to vector<16x8xf32>
    %cst_32 = arith.constant dense<0.000000e+00> : vector<16x16xf32>
    %84 = tpu.matmul %81, %82, %cst_32 {dimension_numbers = #tpu.dot_dimension_numbers<[1], [1], [0], [0], [0, 0, 1, 0], [], []>} : vector<16x8xf32>, vector<16x8xf32>, vector<16x16xf32> -> vector<16x16xf32>
    %85 = arith.addf %84, %43 : vector<16x16xf32>
    %cst_33 = arith.constant dense<0xFF800000> : vector<16xf32>
    %86 = vector.multi_reduction <maximumf>, %85, %cst_33 [1] : vector<16x16xf32> to vector<16xf32>
    %87 = vector.shape_cast %86 : vector<16xf32> to vector<16x1xf32>
    %88 = vector.broadcast %87 : vector<16x1xf32> to vector<16x16xf32>
    %89 = arith.subf %85, %88 : vector<16x16xf32>
    %90 = math.exp %89 : vector<16x16xf32>
    %cst_34 = arith.constant dense<0.000000e+00> : vector<16xf32>
    %91 = vector.multi_reduction <add>, %90, %cst_34 [1] : vector<16x16xf32> to vector<16xf32>
    %92 = vector.shape_cast %91 : vector<16xf32> to vector<16x1xf32>
    %93 = tpu.reciprocal %92 {approx = true} : vector<16x1xf32> -> vector<16x1xf32>
    %94 = vector.broadcast %93 : vector<16x1xf32> to vector<16x16xf32>
    %95 = arith.mulf %90, %94 : vector<16x16xf32>
    %cst_35 = arith.constant dense<0.000000e+00> : vector<16x8xf32>
    %96 = tpu.matmul %95, %83, %cst_35 {dimension_numbers = #tpu.dot_dimension_numbers<[1], [0], [0], [1], [0, 0, 1, 1], [], []>} : vector<16x16xf32>, vector<16x8xf32>, vector<16x8xf32> -> vector<16x8xf32>
    %97 = vector.extract_strided_slice %48 {offsets = [0, 24], sizes = [16, 8], strides = [1, 1]} : vector<16x96xf32> to vector<16x8xf32>
    %98 = vector.extract_strided_slice %48 {offsets = [0, 56], sizes = [16, 8], strides = [1, 1]} : vector<16x96xf32> to vector<16x8xf32>
    %99 = vector.extract_strided_slice %48 {offsets = [0, 88], sizes = [16, 8], strides = [1, 1]} : vector<16x96xf32> to vector<16x8xf32>
    %cst_36 = arith.constant dense<0.000000e+00> : vector<16x16xf32>
    %100 = tpu.matmul %97, %98, %cst_36 {dimension_numbers = #tpu.dot_dimension_numbers<[1], [1], [0], [0], [0, 0, 1, 0], [], []>} : vector<16x8xf32>, vector<16x8xf32>, vector<16x16xf32> -> vector<16x16xf32>
    %101 = arith.addf %100, %43 : vector<16x16xf32>
    %cst_37 = arith.constant dense<0xFF800000> : vector<16xf32>
    %102 = vector.multi_reduction <maximumf>, %101, %cst_37 [1] : vector<16x16xf32> to vector<16xf32>
    %103 = vector.shape_cast %102 : vector<16xf32> to vector<16x1xf32>
    %104 = vector.broadcast %103 : vector<16x1xf32> to vector<16x16xf32>
    %105 = arith.subf %101, %104 : vector<16x16xf32>
    %106 = math.exp %105 : vector<16x16xf32>
    %cst_38 = arith.constant dense<0.000000e+00> : vector<16xf32>
    %107 = vector.multi_reduction <add>, %106, %cst_38 [1] : vector<16x16xf32> to vector<16xf32>
    %108 = vector.shape_cast %107 : vector<16xf32> to vector<16x1xf32>
    %109 = tpu.reciprocal %108 {approx = true} : vector<16x1xf32> -> vector<16x1xf32>
    %110 = vector.broadcast %109 : vector<16x1xf32> to vector<16x16xf32>
    %111 = arith.mulf %106, %110 : vector<16x16xf32>
    %cst_39 = arith.constant dense<0.000000e+00> : vector<16x8xf32>
    %112 = tpu.matmul %111, %99, %cst_39 {dimension_numbers = #tpu.dot_dimension_numbers<[1], [0], [0], [1], [0, 0, 1, 1], [], []>} : vector<16x16xf32>, vector<16x8xf32>, vector<16x8xf32> -> vector<16x8xf32>
    %113 = tpu.concatenate %64, %80, %96, %112 in 1 : vector<16x8xf32>, vector<16x8xf32>, vector<16x8xf32>, vector<16x8xf32> -> vector<16x32xf32>
    %c120 = arith.constant 120 : index
    %c0_40 = arith.constant 0 : index
    %114 = vector.load %arg3[%c120, %c0_40] : memref<328x32xf32, #tpu.memory_space<vmem>>, vector<32x32xf32>
    %c312 = arith.constant 312 : index
    %c0_41 = arith.constant 0 : index
    %115 = vector.load %arg3[%c312, %c0_41] : memref<328x32xf32, #tpu.memory_space<vmem>>, vector<6x32xf32>
    %cst_42 = arith.constant dense<0.000000e+00> : vector<16x32xf32>
    %116 = tpu.matmul %113, %114, %cst_42 {dimension_numbers = #tpu.dot_dimension_numbers<[1], [0], [0], [1], [0, 0, 1, 1], [], []>} : vector<16x32xf32>, vector<32x32xf32>, vector<16x32xf32> -> vector<16x32xf32>
    %117 = vector.extract_strided_slice %115 {offsets = [0, 0], sizes = [1, 32], strides = [1, 1]} : vector<6x32xf32> to vector<1x32xf32>
    %118 = vector.broadcast %117 : vector<1x32xf32> to vector<16x32xf32>
    %119 = arith.addf %116, %118 : vector<16x32xf32>
    %120 = arith.addf %119, %34 : vector<16x32xf32>
    %121 = vector.extract_strided_slice %115 {offsets = [1, 0], sizes = [1, 32], strides = [1, 1]} : vector<6x32xf32> to vector<1x32xf32>
    %122 = vector.extract_strided_slice %115 {offsets = [2, 0], sizes = [1, 32], strides = [1, 1]} : vector<6x32xf32> to vector<1x32xf32>
    %cst_43 = arith.constant dense<0.000000e+00> : vector<16xf32>
    %123 = vector.multi_reduction <add>, %120, %cst_43 [1] : vector<16x32xf32> to vector<16xf32>
    %124 = vector.shape_cast %123 : vector<16xf32> to vector<16x1xf32>
    %cst_44 = arith.constant 3.200000e+01 : f32
    %125 = vector.broadcast %cst_44 : f32 to vector<16x1xf32>
    %126 = arith.divf %124, %125 : vector<16x1xf32>
    %127 = vector.broadcast %126 : vector<16x1xf32> to vector<16x32xf32>
    %128 = arith.subf %120, %127 : vector<16x32xf32>
    %129 = arith.mulf %128, %128 : vector<16x32xf32>
    %cst_45 = arith.constant dense<0.000000e+00> : vector<16xf32>
    %130 = vector.multi_reduction <add>, %129, %cst_45 [1] : vector<16x32xf32> to vector<16xf32>
    %131 = vector.shape_cast %130 : vector<16xf32> to vector<16x1xf32>
    %cst_46 = arith.constant 3.200000e+01 : f32
    %132 = vector.broadcast %cst_46 : f32 to vector<16x1xf32>
    %133 = arith.divf %131, %132 : vector<16x1xf32>
    %134 = vector.broadcast %126 : vector<16x1xf32> to vector<16x32xf32>
    %135 = arith.subf %120, %134 : vector<16x32xf32>
    %cst_47 = arith.constant 9.99999996E-13 : f32
    %136 = vector.broadcast %cst_47 : f32 to vector<16x1xf32>
    %137 = arith.addf %133, %136 : vector<16x1xf32>
    %138 = math.rsqrt %137 : vector<16x1xf32>
    %139 = vector.broadcast %138 : vector<16x1xf32> to vector<16x32xf32>
    %140 = arith.mulf %135, %139 : vector<16x32xf32>
    %141 = vector.broadcast %121 : vector<1x32xf32> to vector<16x32xf32>
    %142 = arith.mulf %140, %141 : vector<16x32xf32>
    %143 = vector.broadcast %122 : vector<1x32xf32> to vector<16x32xf32>
    %144 = arith.addf %142, %143 : vector<16x32xf32>
    %c0_48 = arith.constant 0 : index
    %c0_49 = arith.constant 0 : index
    %145 = vector.load %arg5[%c0_48, %c0_49] : memref<72x64xf32, #tpu.memory_space<vmem>>, vector<32x64xf32>
    %c64_50 = arith.constant 64 : index
    %c0_51 = arith.constant 0 : index
    %146 = vector.load %arg5[%c64_50, %c0_51] : memref<72x64xf32, #tpu.memory_space<vmem>>, vector<1x64xf32>
    %c184 = arith.constant 184 : index
    %c0_52 = arith.constant 0 : index
    %147 = vector.load %arg3[%c184, %c0_52] : memref<328x32xf32, #tpu.memory_space<vmem>>, vector<64x32xf32>
    %cst_53 = arith.constant dense<0.000000e+00> : vector<16x64xf32>
    %148 = tpu.matmul %144, %145, %cst_53 {dimension_numbers = #tpu.dot_dimension_numbers<[1], [0], [0], [1], [0, 0, 1, 1], [], []>} : vector<16x32xf32>, vector<32x64xf32>, vector<16x64xf32> -> vector<16x64xf32>
    %149 = vector.broadcast %146 : vector<1x64xf32> to vector<16x64xf32>
    %150 = arith.addf %148, %149 : vector<16x64xf32>
    %cst_54 = arith.constant 0.707106769 : f32
    %151 = vector.broadcast %cst_54 : f32 to vector<16x64xf32>
    %152 = arith.mulf %150, %151 : vector<16x64xf32>
    %cst_55 = arith.constant 0.000000e+00 : f32
    %153 = vector.broadcast %cst_55 : f32 to vector<16x64xf32>
    %154 = arith.cmpf oge, %152, %153 : vector<16x64xf32>
    %cst_56 = arith.constant 1.000000e+00 : f32
    %cst_57 = arith.constant -1.000000e+00 : f32
    %155 = vector.broadcast %cst_56 : f32 to vector<16x64xf32>
    %156 = vector.broadcast %cst_57 : f32 to vector<16x64xf32>
    %157 = arith.select %154, %155, %156 : vector<16x64xi1>, vector<16x64xf32>
    %158 = math.absf %152 : vector<16x64xf32>
    %cst_58 = arith.constant 0.327591091 : f32
    %159 = vector.broadcast %cst_58 : f32 to vector<16x64xf32>
    %160 = arith.mulf %159, %158 : vector<16x64xf32>
    %cst_59 = arith.constant 1.000000e+00 : f32
    %161 = vector.broadcast %cst_59 : f32 to vector<16x64xf32>
    %162 = arith.addf %161, %160 : vector<16x64xf32>
    %cst_60 = arith.constant 1.000000e+00 : f32
    %163 = vector.broadcast %cst_60 : f32 to vector<16x64xf32>
    %164 = arith.divf %163, %162 : vector<16x64xf32>
    %cst_61 = arith.constant 1.06140542 : f32
    %165 = vector.broadcast %cst_61 : f32 to vector<16x64xf32>
    %166 = arith.mulf %165, %164 : vector<16x64xf32>
    %cst_62 = arith.constant -1.45315206 : f32
    %167 = vector.broadcast %cst_62 : f32 to vector<16x64xf32>
    %168 = arith.addf %166, %167 : vector<16x64xf32>
    %169 = arith.mulf %168, %164 : vector<16x64xf32>
    %cst_63 = arith.constant 1.42141378 : f32
    %170 = vector.broadcast %cst_63 : f32 to vector<16x64xf32>
    %171 = arith.addf %169, %170 : vector<16x64xf32>
    %172 = arith.mulf %171, %164 : vector<16x64xf32>
    %cst_64 = arith.constant -0.284496725 : f32
    %173 = vector.broadcast %cst_64 : f32 to vector<16x64xf32>
    %174 = arith.addf %172, %173 : vector<16x64xf32>
    %175 = arith.mulf %174, %164 : vector<16x64xf32>
    %cst_65 = arith.constant 0.254829586 : f32
    %176 = vector.broadcast %cst_65 : f32 to vector<16x64xf32>
    %177 = arith.addf %175, %176 : vector<16x64xf32>
    %178 = arith.mulf %177, %164 : vector<16x64xf32>
    %cst_66 = arith.constant 0.000000e+00 : f32
    %179 = vector.broadcast %cst_66 : f32 to vector<16x64xf32>
    %180 = arith.subf %179, %158 : vector<16x64xf32>
    %181 = arith.mulf %180, %158 : vector<16x64xf32>
    %182 = math.exp %181 : vector<16x64xf32>
    %183 = arith.mulf %178, %182 : vector<16x64xf32>
    %cst_67 = arith.constant 1.000000e+00 : f32
    %184 = vector.broadcast %cst_67 : f32 to vector<16x64xf32>
    %185 = arith.subf %184, %183 : vector<16x64xf32>
    %186 = arith.mulf %157, %185 : vector<16x64xf32>
    %cst_68 = arith.constant 5.000000e-01 : f32
    %187 = vector.broadcast %cst_68 : f32 to vector<16x64xf32>
    %188 = arith.mulf %187, %150 : vector<16x64xf32>
    %cst_69 = arith.constant 1.000000e+00 : f32
    %189 = vector.broadcast %cst_69 : f32 to vector<16x64xf32>
    %190 = arith.addf %189, %186 : vector<16x64xf32>
    %191 = arith.mulf %188, %190 : vector<16x64xf32>
    %cst_70 = arith.constant dense<0.000000e+00> : vector<16x32xf32>
    %192 = tpu.matmul %191, %147, %cst_70 {dimension_numbers = #tpu.dot_dimension_numbers<[1], [0], [0], [1], [0, 0, 1, 1], [], []>} : vector<16x64xf32>, vector<64x32xf32>, vector<16x32xf32> -> vector<16x32xf32>
    %193 = vector.extract_strided_slice %115 {offsets = [3, 0], sizes = [1, 32], strides = [1, 1]} : vector<6x32xf32> to vector<1x32xf32>
    %194 = vector.broadcast %193 : vector<1x32xf32> to vector<16x32xf32>
    %195 = arith.addf %192, %194 : vector<16x32xf32>
    %196 = arith.addf %195, %144 : vector<16x32xf32>
    %197 = vector.extract_strided_slice %115 {offsets = [4, 0], sizes = [1, 32], strides = [1, 1]} : vector<6x32xf32> to vector<1x32xf32>
    %198 = vector.extract_strided_slice %115 {offsets = [5, 0], sizes = [1, 32], strides = [1, 1]} : vector<6x32xf32> to vector<1x32xf32>
    %cst_71 = arith.constant dense<0.000000e+00> : vector<16xf32>
    %199 = vector.multi_reduction <add>, %196, %cst_71 [1] : vector<16x32xf32> to vector<16xf32>
    %200 = vector.shape_cast %199 : vector<16xf32> to vector<16x1xf32>
    %cst_72 = arith.constant 3.200000e+01 : f32
    %201 = vector.broadcast %cst_72 : f32 to vector<16x1xf32>
    %202 = arith.divf %200, %201 : vector<16x1xf32>
    %203 = vector.broadcast %202 : vector<16x1xf32> to vector<16x32xf32>
    %204 = arith.subf %196, %203 : vector<16x32xf32>
    %205 = arith.mulf %204, %204 : vector<16x32xf32>
    %cst_73 = arith.constant dense<0.000000e+00> : vector<16xf32>
    %206 = vector.multi_reduction <add>, %205, %cst_73 [1] : vector<16x32xf32> to vector<16xf32>
    %207 = vector.shape_cast %206 : vector<16xf32> to vector<16x1xf32>
    %cst_74 = arith.constant 3.200000e+01 : f32
    %208 = vector.broadcast %cst_74 : f32 to vector<16x1xf32>
    %209 = arith.divf %207, %208 : vector<16x1xf32>
    %210 = vector.broadcast %202 : vector<16x1xf32> to vector<16x32xf32>
    %211 = arith.subf %196, %210 : vector<16x32xf32>
    %cst_75 = arith.constant 9.99999996E-13 : f32
    %212 = vector.broadcast %cst_75 : f32 to vector<16x1xf32>
    %213 = arith.addf %209, %212 : vector<16x1xf32>
    %214 = math.rsqrt %213 : vector<16x1xf32>
    %215 = vector.broadcast %214 : vector<16x1xf32> to vector<16x32xf32>
    %216 = arith.mulf %211, %215 : vector<16x32xf32>
    %217 = vector.broadcast %197 : vector<1x32xf32> to vector<16x32xf32>
    %218 = arith.mulf %216, %217 : vector<16x32xf32>
    %219 = vector.broadcast %198 : vector<1x32xf32> to vector<16x32xf32>
    %220 = arith.addf %218, %219 : vector<16x32xf32>
    %c32 = arith.constant 32 : index
    %c0_76 = arith.constant 0 : index
    %221 = vector.load %arg4[%c32, %c0_76] : memref<72x96xf32, #tpu.memory_space<vmem>>, vector<32x96xf32>
    %c65 = arith.constant 65 : index
    %c0_77 = arith.constant 0 : index
    %222 = vector.load %arg4[%c65, %c0_77] : memref<72x96xf32, #tpu.memory_space<vmem>>, vector<1x96xf32>
    %cst_78 = arith.constant dense<0.000000e+00> : vector<16x96xf32>
    %223 = tpu.matmul %220, %221, %cst_78 {dimension_numbers = #tpu.dot_dimension_numbers<[1], [0], [0], [1], [0, 0, 1, 1], [], []>} : vector<16x32xf32>, vector<32x96xf32>, vector<16x96xf32> -> vector<16x96xf32>
    %224 = vector.broadcast %222 : vector<1x96xf32> to vector<16x96xf32>
    %225 = arith.addf %223, %224 : vector<16x96xf32>
    %226 = vector.extract_strided_slice %225 {offsets = [0, 0], sizes = [16, 8], strides = [1, 1]} : vector<16x96xf32> to vector<16x8xf32>
    %227 = vector.extract_strided_slice %225 {offsets = [0, 32], sizes = [16, 8], strides = [1, 1]} : vector<16x96xf32> to vector<16x8xf32>
    %228 = vector.extract_strided_slice %225 {offsets = [0, 64], sizes = [16, 8], strides = [1, 1]} : vector<16x96xf32> to vector<16x8xf32>
    %cst_79 = arith.constant dense<0.000000e+00> : vector<16x16xf32>
    %229 = tpu.matmul %226, %227, %cst_79 {dimension_numbers = #tpu.dot_dimension_numbers<[1], [1], [0], [0], [0, 0, 1, 0], [], []>} : vector<16x8xf32>, vector<16x8xf32>, vector<16x16xf32> -> vector<16x16xf32>
    %230 = arith.addf %229, %43 : vector<16x16xf32>
    %cst_80 = arith.constant dense<0xFF800000> : vector<16xf32>
    %231 = vector.multi_reduction <maximumf>, %230, %cst_80 [1] : vector<16x16xf32> to vector<16xf32>
    %232 = vector.shape_cast %231 : vector<16xf32> to vector<16x1xf32>
    %233 = vector.broadcast %232 : vector<16x1xf32> to vector<16x16xf32>
    %234 = arith.subf %230, %233 : vector<16x16xf32>
    %235 = math.exp %234 : vector<16x16xf32>
    %cst_81 = arith.constant dense<0.000000e+00> : vector<16xf32>
    %236 = vector.multi_reduction <add>, %235, %cst_81 [1] : vector<16x16xf32> to vector<16xf32>
    %237 = vector.shape_cast %236 : vector<16xf32> to vector<16x1xf32>
    %238 = tpu.reciprocal %237 {approx = true} : vector<16x1xf32> -> vector<16x1xf32>
    %239 = vector.broadcast %238 : vector<16x1xf32> to vector<16x16xf32>
    %240 = arith.mulf %235, %239 : vector<16x16xf32>
    %cst_82 = arith.constant dense<0.000000e+00> : vector<16x8xf32>
    %241 = tpu.matmul %240, %228, %cst_82 {dimension_numbers = #tpu.dot_dimension_numbers<[1], [0], [0], [1], [0, 0, 1, 1], [], []>} : vector<16x16xf32>, vector<16x8xf32>, vector<16x8xf32> -> vector<16x8xf32>
    %242 = vector.extract_strided_slice %225 {offsets = [0, 8], sizes = [16, 8], strides = [1, 1]} : vector<16x96xf32> to vector<16x8xf32>
    %243 = vector.extract_strided_slice %225 {offsets = [0, 40], sizes = [16, 8], strides = [1, 1]} : vector<16x96xf32> to vector<16x8xf32>
    %244 = vector.extract_strided_slice %225 {offsets = [0, 72], sizes = [16, 8], strides = [1, 1]} : vector<16x96xf32> to vector<16x8xf32>
    %cst_83 = arith.constant dense<0.000000e+00> : vector<16x16xf32>
    %245 = tpu.matmul %242, %243, %cst_83 {dimension_numbers = #tpu.dot_dimension_numbers<[1], [1], [0], [0], [0, 0, 1, 0], [], []>} : vector<16x8xf32>, vector<16x8xf32>, vector<16x16xf32> -> vector<16x16xf32>
    %246 = arith.addf %245, %43 : vector<16x16xf32>
    %cst_84 = arith.constant dense<0xFF800000> : vector<16xf32>
    %247 = vector.multi_reduction <maximumf>, %246, %cst_84 [1] : vector<16x16xf32> to vector<16xf32>
    %248 = vector.shape_cast %247 : vector<16xf32> to vector<16x1xf32>
    %249 = vector.broadcast %248 : vector<16x1xf32> to vector<16x16xf32>
    %250 = arith.subf %246, %249 : vector<16x16xf32>
    %251 = math.exp %250 : vector<16x16xf32>
    %cst_85 = arith.constant dense<0.000000e+00> : vector<16xf32>
    %252 = vector.multi_reduction <add>, %251, %cst_85 [1] : vector<16x16xf32> to vector<16xf32>
    %253 = vector.shape_cast %252 : vector<16xf32> to vector<16x1xf32>
    %254 = tpu.reciprocal %253 {approx = true} : vector<16x1xf32> -> vector<16x1xf32>
    %255 = vector.broadcast %254 : vector<16x1xf32> to vector<16x16xf32>
    %256 = arith.mulf %251, %255 : vector<16x16xf32>
    %cst_86 = arith.constant dense<0.000000e+00> : vector<16x8xf32>
    %257 = tpu.matmul %256, %244, %cst_86 {dimension_numbers = #tpu.dot_dimension_numbers<[1], [0], [0], [1], [0, 0, 1, 1], [], []>} : vector<16x16xf32>, vector<16x8xf32>, vector<16x8xf32> -> vector<16x8xf32>
    %258 = vector.extract_strided_slice %225 {offsets = [0, 16], sizes = [16, 8], strides = [1, 1]} : vector<16x96xf32> to vector<16x8xf32>
    %259 = vector.extract_strided_slice %225 {offsets = [0, 48], sizes = [16, 8], strides = [1, 1]} : vector<16x96xf32> to vector<16x8xf32>
    %260 = vector.extract_strided_slice %225 {offsets = [0, 80], sizes = [16, 8], strides = [1, 1]} : vector<16x96xf32> to vector<16x8xf32>
    %cst_87 = arith.constant dense<0.000000e+00> : vector<16x16xf32>
    %261 = tpu.matmul %258, %259, %cst_87 {dimension_numbers = #tpu.dot_dimension_numbers<[1], [1], [0], [0], [0, 0, 1, 0], [], []>} : vector<16x8xf32>, vector<16x8xf32>, vector<16x16xf32> -> vector<16x16xf32>
    %262 = arith.addf %261, %43 : vector<16x16xf32>
    %cst_88 = arith.constant dense<0xFF800000> : vector<16xf32>
    %263 = vector.multi_reduction <maximumf>, %262, %cst_88 [1] : vector<16x16xf32> to vector<16xf32>
    %264 = vector.shape_cast %263 : vector<16xf32> to vector<16x1xf32>
    %265 = vector.broadcast %264 : vector<16x1xf32> to vector<16x16xf32>
    %266 = arith.subf %262, %265 : vector<16x16xf32>
    %267 = math.exp %266 : vector<16x16xf32>
    %cst_89 = arith.constant dense<0.000000e+00> : vector<16xf32>
    %268 = vector.multi_reduction <add>, %267, %cst_89 [1] : vector<16x16xf32> to vector<16xf32>
    %269 = vector.shape_cast %268 : vector<16xf32> to vector<16x1xf32>
    %270 = tpu.reciprocal %269 {approx = true} : vector<16x1xf32> -> vector<16x1xf32>
    %271 = vector.broadcast %270 : vector<16x1xf32> to vector<16x16xf32>
    %272 = arith.mulf %267, %271 : vector<16x16xf32>
    %cst_90 = arith.constant dense<0.000000e+00> : vector<16x8xf32>
    %273 = tpu.matmul %272, %260, %cst_90 {dimension_numbers = #tpu.dot_dimension_numbers<[1], [0], [0], [1], [0, 0, 1, 1], [], []>} : vector<16x16xf32>, vector<16x8xf32>, vector<16x8xf32> -> vector<16x8xf32>
    %274 = vector.extract_strided_slice %225 {offsets = [0, 24], sizes = [16, 8], strides = [1, 1]} : vector<16x96xf32> to vector<16x8xf32>
    %275 = vector.extract_strided_slice %225 {offsets = [0, 56], sizes = [16, 8], strides = [1, 1]} : vector<16x96xf32> to vector<16x8xf32>
    %276 = vector.extract_strided_slice %225 {offsets = [0, 88], sizes = [16, 8], strides = [1, 1]} : vector<16x96xf32> to vector<16x8xf32>
    %cst_91 = arith.constant dense<0.000000e+00> : vector<16x16xf32>
    %277 = tpu.matmul %274, %275, %cst_91 {dimension_numbers = #tpu.dot_dimension_numbers<[1], [1], [0], [0], [0, 0, 1, 0], [], []>} : vector<16x8xf32>, vector<16x8xf32>, vector<16x16xf32> -> vector<16x16xf32>
    %278 = arith.addf %277, %43 : vector<16x16xf32>
    %cst_92 = arith.constant dense<0xFF800000> : vector<16xf32>
    %279 = vector.multi_reduction <maximumf>, %278, %cst_92 [1] : vector<16x16xf32> to vector<16xf32>
    %280 = vector.shape_cast %279 : vector<16xf32> to vector<16x1xf32>
    %281 = vector.broadcast %280 : vector<16x1xf32> to vector<16x16xf32>
    %282 = arith.subf %278, %281 : vector<16x16xf32>
    %283 = math.exp %282 : vector<16x16xf32>
    %cst_93 = arith.constant dense<0.000000e+00> : vector<16xf32>
    %284 = vector.multi_reduction <add>, %283, %cst_93 [1] : vector<16x16xf32> to vector<16xf32>
    %285 = vector.shape_cast %284 : vector<16xf32> to vector<16x1xf32>
    %286 = tpu.reciprocal %285 {approx = true} : vector<16x1xf32> -> vector<16x1xf32>
    %287 = vector.broadcast %286 : vector<16x1xf32> to vector<16x16xf32>
    %288 = arith.mulf %283, %287 : vector<16x16xf32>
    %cst_94 = arith.constant dense<0.000000e+00> : vector<16x8xf32>
    %289 = tpu.matmul %288, %276, %cst_94 {dimension_numbers = #tpu.dot_dimension_numbers<[1], [0], [0], [1], [0, 0, 1, 1], [], []>} : vector<16x16xf32>, vector<16x8xf32>, vector<16x8xf32> -> vector<16x8xf32>
    %290 = tpu.concatenate %241, %257, %273, %289 in 1 : vector<16x8xf32>, vector<16x8xf32>, vector<16x8xf32>, vector<16x8xf32> -> vector<16x32xf32>
    %c152 = arith.constant 152 : index
    %c0_95 = arith.constant 0 : index
    %291 = vector.load %arg3[%c152, %c0_95] : memref<328x32xf32, #tpu.memory_space<vmem>>, vector<32x32xf32>
    %c318 = arith.constant 318 : index
    %c0_96 = arith.constant 0 : index
    %292 = vector.load %arg3[%c318, %c0_96] : memref<328x32xf32, #tpu.memory_space<vmem>>, vector<6x32xf32>
    %cst_97 = arith.constant dense<0.000000e+00> : vector<16x32xf32>
    %293 = tpu.matmul %290, %291, %cst_97 {dimension_numbers = #tpu.dot_dimension_numbers<[1], [0], [0], [1], [0, 0, 1, 1], [], []>} : vector<16x32xf32>, vector<32x32xf32>, vector<16x32xf32> -> vector<16x32xf32>
    %294 = vector.extract_strided_slice %292 {offsets = [0, 0], sizes = [1, 32], strides = [1, 1]} : vector<6x32xf32> to vector<1x32xf32>
    %295 = vector.broadcast %294 : vector<1x32xf32> to vector<16x32xf32>
    %296 = arith.addf %293, %295 : vector<16x32xf32>
    %297 = arith.addf %296, %220 : vector<16x32xf32>
    %298 = vector.extract_strided_slice %292 {offsets = [1, 0], sizes = [1, 32], strides = [1, 1]} : vector<6x32xf32> to vector<1x32xf32>
    %299 = vector.extract_strided_slice %292 {offsets = [2, 0], sizes = [1, 32], strides = [1, 1]} : vector<6x32xf32> to vector<1x32xf32>
    %cst_98 = arith.constant dense<0.000000e+00> : vector<16xf32>
    %300 = vector.multi_reduction <add>, %297, %cst_98 [1] : vector<16x32xf32> to vector<16xf32>
    %301 = vector.shape_cast %300 : vector<16xf32> to vector<16x1xf32>
    %cst_99 = arith.constant 3.200000e+01 : f32
    %302 = vector.broadcast %cst_99 : f32 to vector<16x1xf32>
    %303 = arith.divf %301, %302 : vector<16x1xf32>
    %304 = vector.broadcast %303 : vector<16x1xf32> to vector<16x32xf32>
    %305 = arith.subf %297, %304 : vector<16x32xf32>
    %306 = arith.mulf %305, %305 : vector<16x32xf32>
    %cst_100 = arith.constant dense<0.000000e+00> : vector<16xf32>
    %307 = vector.multi_reduction <add>, %306, %cst_100 [1] : vector<16x32xf32> to vector<16xf32>
    %308 = vector.shape_cast %307 : vector<16xf32> to vector<16x1xf32>
    %cst_101 = arith.constant 3.200000e+01 : f32
    %309 = vector.broadcast %cst_101 : f32 to vector<16x1xf32>
    %310 = arith.divf %308, %309 : vector<16x1xf32>
    %311 = vector.broadcast %303 : vector<16x1xf32> to vector<16x32xf32>
    %312 = arith.subf %297, %311 : vector<16x32xf32>
    %cst_102 = arith.constant 9.99999996E-13 : f32
    %313 = vector.broadcast %cst_102 : f32 to vector<16x1xf32>
    %314 = arith.addf %310, %313 : vector<16x1xf32>
    %315 = math.rsqrt %314 : vector<16x1xf32>
    %316 = vector.broadcast %315 : vector<16x1xf32> to vector<16x32xf32>
    %317 = arith.mulf %312, %316 : vector<16x32xf32>
    %318 = vector.broadcast %298 : vector<1x32xf32> to vector<16x32xf32>
    %319 = arith.mulf %317, %318 : vector<16x32xf32>
    %320 = vector.broadcast %299 : vector<1x32xf32> to vector<16x32xf32>
    %321 = arith.addf %319, %320 : vector<16x32xf32>
    %c32_103 = arith.constant 32 : index
    %c0_104 = arith.constant 0 : index
    %322 = vector.load %arg5[%c32_103, %c0_104] : memref<72x64xf32, #tpu.memory_space<vmem>>, vector<32x64xf32>
    %c65_105 = arith.constant 65 : index
    %c0_106 = arith.constant 0 : index
    %323 = vector.load %arg5[%c65_105, %c0_106] : memref<72x64xf32, #tpu.memory_space<vmem>>, vector<1x64xf32>
    %c248 = arith.constant 248 : index
    %c0_107 = arith.constant 0 : index
    %324 = vector.load %arg3[%c248, %c0_107] : memref<328x32xf32, #tpu.memory_space<vmem>>, vector<64x32xf32>
    %cst_108 = arith.constant dense<0.000000e+00> : vector<16x64xf32>
    %325 = tpu.matmul %321, %322, %cst_108 {dimension_numbers = #tpu.dot_dimension_numbers<[1], [0], [0], [1], [0, 0, 1, 1], [], []>} : vector<16x32xf32>, vector<32x64xf32>, vector<16x64xf32> -> vector<16x64xf32>
    %326 = vector.broadcast %323 : vector<1x64xf32> to vector<16x64xf32>
    %327 = arith.addf %325, %326 : vector<16x64xf32>
    %cst_109 = arith.constant 0.707106769 : f32
    %328 = vector.broadcast %cst_109 : f32 to vector<16x64xf32>
    %329 = arith.mulf %327, %328 : vector<16x64xf32>
    %cst_110 = arith.constant 0.000000e+00 : f32
    %330 = vector.broadcast %cst_110 : f32 to vector<16x64xf32>
    %331 = arith.cmpf oge, %329, %330 : vector<16x64xf32>
    %cst_111 = arith.constant 1.000000e+00 : f32
    %cst_112 = arith.constant -1.000000e+00 : f32
    %332 = vector.broadcast %cst_111 : f32 to vector<16x64xf32>
    %333 = vector.broadcast %cst_112 : f32 to vector<16x64xf32>
    %334 = arith.select %331, %332, %333 : vector<16x64xi1>, vector<16x64xf32>
    %335 = math.absf %329 : vector<16x64xf32>
    %cst_113 = arith.constant 0.327591091 : f32
    %336 = vector.broadcast %cst_113 : f32 to vector<16x64xf32>
    %337 = arith.mulf %336, %335 : vector<16x64xf32>
    %cst_114 = arith.constant 1.000000e+00 : f32
    %338 = vector.broadcast %cst_114 : f32 to vector<16x64xf32>
    %339 = arith.addf %338, %337 : vector<16x64xf32>
    %cst_115 = arith.constant 1.000000e+00 : f32
    %340 = vector.broadcast %cst_115 : f32 to vector<16x64xf32>
    %341 = arith.divf %340, %339 : vector<16x64xf32>
    %cst_116 = arith.constant 1.06140542 : f32
    %342 = vector.broadcast %cst_116 : f32 to vector<16x64xf32>
    %343 = arith.mulf %342, %341 : vector<16x64xf32>
    %cst_117 = arith.constant -1.45315206 : f32
    %344 = vector.broadcast %cst_117 : f32 to vector<16x64xf32>
    %345 = arith.addf %343, %344 : vector<16x64xf32>
    %346 = arith.mulf %345, %341 : vector<16x64xf32>
    %cst_118 = arith.constant 1.42141378 : f32
    %347 = vector.broadcast %cst_118 : f32 to vector<16x64xf32>
    %348 = arith.addf %346, %347 : vector<16x64xf32>
    %349 = arith.mulf %348, %341 : vector<16x64xf32>
    %cst_119 = arith.constant -0.284496725 : f32
    %350 = vector.broadcast %cst_119 : f32 to vector<16x64xf32>
    %351 = arith.addf %349, %350 : vector<16x64xf32>
    %352 = arith.mulf %351, %341 : vector<16x64xf32>
    %cst_120 = arith.constant 0.254829586 : f32
    %353 = vector.broadcast %cst_120 : f32 to vector<16x64xf32>
    %354 = arith.addf %352, %353 : vector<16x64xf32>
    %355 = arith.mulf %354, %341 : vector<16x64xf32>
    %cst_121 = arith.constant 0.000000e+00 : f32
    %356 = vector.broadcast %cst_121 : f32 to vector<16x64xf32>
    %357 = arith.subf %356, %335 : vector<16x64xf32>
    %358 = arith.mulf %357, %335 : vector<16x64xf32>
    %359 = math.exp %358 : vector<16x64xf32>
    %360 = arith.mulf %355, %359 : vector<16x64xf32>
    %cst_122 = arith.constant 1.000000e+00 : f32
    %361 = vector.broadcast %cst_122 : f32 to vector<16x64xf32>
    %362 = arith.subf %361, %360 : vector<16x64xf32>
    %363 = arith.mulf %334, %362 : vector<16x64xf32>
    %cst_123 = arith.constant 5.000000e-01 : f32
    %364 = vector.broadcast %cst_123 : f32 to vector<16x64xf32>
    %365 = arith.mulf %364, %327 : vector<16x64xf32>
    %cst_124 = arith.constant 1.000000e+00 : f32
    %366 = vector.broadcast %cst_124 : f32 to vector<16x64xf32>
    %367 = arith.addf %366, %363 : vector<16x64xf32>
    %368 = arith.mulf %365, %367 : vector<16x64xf32>
    %cst_125 = arith.constant dense<0.000000e+00> : vector<16x32xf32>
    %369 = tpu.matmul %368, %324, %cst_125 {dimension_numbers = #tpu.dot_dimension_numbers<[1], [0], [0], [1], [0, 0, 1, 1], [], []>} : vector<16x64xf32>, vector<64x32xf32>, vector<16x32xf32> -> vector<16x32xf32>
    %370 = vector.extract_strided_slice %292 {offsets = [3, 0], sizes = [1, 32], strides = [1, 1]} : vector<6x32xf32> to vector<1x32xf32>
    %371 = vector.broadcast %370 : vector<1x32xf32> to vector<16x32xf32>
    %372 = arith.addf %369, %371 : vector<16x32xf32>
    %373 = arith.addf %372, %321 : vector<16x32xf32>
    %374 = vector.extract_strided_slice %292 {offsets = [4, 0], sizes = [1, 32], strides = [1, 1]} : vector<6x32xf32> to vector<1x32xf32>
    %375 = vector.extract_strided_slice %292 {offsets = [5, 0], sizes = [1, 32], strides = [1, 1]} : vector<6x32xf32> to vector<1x32xf32>
    %cst_126 = arith.constant dense<0.000000e+00> : vector<16xf32>
    %376 = vector.multi_reduction <add>, %373, %cst_126 [1] : vector<16x32xf32> to vector<16xf32>
    %377 = vector.shape_cast %376 : vector<16xf32> to vector<16x1xf32>
    %cst_127 = arith.constant 3.200000e+01 : f32
    %378 = vector.broadcast %cst_127 : f32 to vector<16x1xf32>
    %379 = arith.divf %377, %378 : vector<16x1xf32>
    %380 = vector.broadcast %379 : vector<16x1xf32> to vector<16x32xf32>
    %381 = arith.subf %373, %380 : vector<16x32xf32>
    %382 = arith.mulf %381, %381 : vector<16x32xf32>
    %cst_128 = arith.constant dense<0.000000e+00> : vector<16xf32>
    %383 = vector.multi_reduction <add>, %382, %cst_128 [1] : vector<16x32xf32> to vector<16xf32>
    %384 = vector.shape_cast %383 : vector<16xf32> to vector<16x1xf32>
    %cst_129 = arith.constant 3.200000e+01 : f32
    %385 = vector.broadcast %cst_129 : f32 to vector<16x1xf32>
    %386 = arith.divf %384, %385 : vector<16x1xf32>
    %387 = vector.broadcast %379 : vector<16x1xf32> to vector<16x32xf32>
    %388 = arith.subf %373, %387 : vector<16x32xf32>
    %cst_130 = arith.constant 9.99999996E-13 : f32
    %389 = vector.broadcast %cst_130 : f32 to vector<16x1xf32>
    %390 = arith.addf %386, %389 : vector<16x1xf32>
    %391 = math.rsqrt %390 : vector<16x1xf32>
    %392 = vector.broadcast %391 : vector<16x1xf32> to vector<16x32xf32>
    %393 = arith.mulf %388, %392 : vector<16x32xf32>
    %394 = vector.broadcast %374 : vector<1x32xf32> to vector<16x32xf32>
    %395 = arith.mulf %393, %394 : vector<16x32xf32>
    %396 = vector.broadcast %375 : vector<1x32xf32> to vector<16x32xf32>
    %397 = arith.addf %395, %396 : vector<16x32xf32>
    %398 = vector.extract_strided_slice %397 {offsets = [0, 0], sizes = [1, 32], strides = [1, 1]} : vector<16x32xf32> to vector<1x32xf32>
    %399 = vector.extract_strided_slice %397 {offsets = [8, 0], sizes = [1, 32], strides = [1, 1]} : vector<16x32xf32> to vector<1x32xf32>
    %400 = tpu.concatenate %398, %399 in 0 : vector<1x32xf32>, vector<1x32xf32> -> vector<2x32xf32>
    %c88 = arith.constant 88 : index
    %c0_131 = arith.constant 0 : index
    %401 = vector.load %arg3[%c88, %c0_131] : memref<328x32xf32, #tpu.memory_space<vmem>>, vector<32x32xf32>
    %c82 = arith.constant 82 : index
    %c0_132 = arith.constant 0 : index
    %402 = vector.load %arg3[%c82, %c0_132] : memref<328x32xf32, #tpu.memory_space<vmem>>, vector<1x32xf32>
    %cst_133 = arith.constant dense<0.000000e+00> : vector<2x32xf32>
    %403 = tpu.matmul %400, %401, %cst_133 {dimension_numbers = #tpu.dot_dimension_numbers<[1], [0], [0], [1], [0, 0, 1, 1], [], []>} : vector<2x32xf32>, vector<32x32xf32>, vector<2x32xf32> -> vector<2x32xf32>
    %404 = vector.broadcast %402 : vector<1x32xf32> to vector<2x32xf32>
    %405 = arith.addf %403, %404 : vector<2x32xf32>
    %406 = math.tanh %405 : vector<2x32xf32>
    %c0_134 = arith.constant 0 : index
    %c0_135 = arith.constant 0 : index
    %407 = vector.load %arg6[%c0_134, %c0_135] : memref<40x2xf32, #tpu.memory_space<vmem>>, vector<32x2xf32>
    %c32_136 = arith.constant 32 : index
    %c0_137 = arith.constant 0 : index
    %408 = vector.load %arg6[%c32_136, %c0_137] : memref<40x2xf32, #tpu.memory_space<vmem>>, vector<1x2xf32>
    %cst_138 = arith.constant dense<0.000000e+00> : vector<2x2xf32>
    %409 = tpu.matmul %406, %407, %cst_138 {dimension_numbers = #tpu.dot_dimension_numbers<[1], [0], [0], [1], [0, 0, 1, 1], [], []>} : vector<2x32xf32>, vector<32x2xf32>, vector<2x2xf32> -> vector<2x2xf32>
    %410 = vector.broadcast %408 : vector<1x2xf32> to vector<2x2xf32>
    %411 = arith.addf %409, %410 : vector<2x2xf32>
    %c0_139 = arith.constant 0 : index
    %c0_140 = arith.constant 0 : index
    %412 = vector.load %arg7[%c0_139, %c0_140] : memref<2x2xf32, #tpu.memory_space<vmem>>, vector<2x2xf32>
    tpu.vector_store %arg7[%c0_139, %c0_140], %411 {strides = array<i32>} : memref<2x2xf32, #tpu.memory_space<vmem>>, vector<2x2xf32>,
    return
  }
}

</mosaic_0001>

<llo_original>
// kernel: transformer_forward.1
$region0: #{transformer_forward.1}
  #allocation0 [shape = 'u32[]', space=smem, size = 0x4, offset = 0x4, fixed_abs, tag = 'smem constant byte address 0x4 - core index']
  #allocation1 [shape = 'u32[72,128]{1,0:T(1,128)}', space=vmem, size = 0x9000, scoped, tag = 'internal scratch']
  %s0 = inlined_call_operand.vmem [shape: s32[16,1], index: 0, kind: input, shape index: {}]
  %s1 = inlined_call_operand.vmem [shape: s32[1,16], index: 1, kind: input, shape index: {}]
  %s2 = inlined_call_operand.vmem [shape: f32[16,16], index: 2, kind: input, shape index: {}]
  %s3 = inlined_call_operand.vmem [shape: f32[328,32], index: 3, kind: input, shape index: {}]
  %s4 = inlined_call_operand.vmem [shape: f32[72,96], index: 4, kind: input, shape index: {}]
  %s5 = inlined_call_operand.vmem [shape: f32[72,64], index: 5, kind: input, shape index: {}]
  %s6 = inlined_call_operand.vmem [shape: f32[40,2], index: 6, kind: input, shape index: {}]
  %s7 = inlined_call_operand.hbm [shape: f32[2,2], index: 7, kind: output, shape index: {}]
  %s8 = sld [smem:[#allocation0]]
  $region38: #{transformer_forward.1} parent=0
    _
  %s10 = ssub.s32 1, %s8
  %s11 = scalar_select 0, %s10, %s8
  $region1: #{transformer_forward.1} parent=0
    #allocation2 [shape = 'u8[1024]{0}', space=vmem, size = 0x400, scoped, tag = 'output window, operand 0, single buffered']
    #allocation3 [shape = 's32[1]{0}', space=sflag, size = 0x4, scoped, tag = 'scoped memory for transformer_forward.1']
    %12 = vsyncpa [#allocation3], 0
    // Predicated region
    $region2: #{transformer_forward.1} parent=1 // pred_check
      _
    $region3: #{transformer_forward.1} parent=1 // pred_check_branch
      %14 = sbr.rel (0) target = $region5
    $region4: #{transformer_forward.1} parent=1 // pred_region
      _
    $region5: #{transformer_forward.1} parent=1 // pred_fallthru
      _
    // Predicated region
    $region6: #{transformer_forward.1} parent=1 // pred_check
      _
    $region7: #{transformer_forward.1} parent=1 // pred_check_branch
      %16 = sbr.rel (0) target = $region9
    $region8: #{transformer_forward.1} parent=1 // pred_region
      _
    $region9: #{transformer_forward.1} parent=1 // pred_fallthru
      _
    // Predicated region
    $region10: #{transformer_forward.1} parent=1 // pred_check
      _
    $region11: #{transformer_forward.1} parent=1 // pred_check_branch
      %18 = sbr.rel (0) target = $region13
    $region12: #{transformer_forward.1} parent=1 // pred_region
      _
    $region13: #{transformer_forward.1} parent=1 // pred_fallthru
      _
    // Predicated region
    $region14: #{transformer_forward.1} parent=1 // pred_check
      _
    $region15: #{transformer_forward.1} parent=1 // pred_check_branch
      %20 = sbr.rel (0) target = $region17
    $region16: #{transformer_forward.1} parent=1 // pred_region
      _
    $region17: #{transformer_forward.1} parent=1 // pred_fallthru
      _
    // Predicated region
    $region18: #{transformer_forward.1} parent=1 // pred_check
      _
    $region19: #{transformer_forward.1} parent=1 // pred_check_branch
      %22 = sbr.rel (0) target = $region21
    $region20: #{transformer_forward.1} parent=1 // pred_region
      _
    $region21: #{transformer_forward.1} parent=1 // pred_fallthru
      _
    // Predicated region
    $region22: #{transformer_forward.1} parent=1 // pred_check
      _
    $region23: #{transformer_forward.1} parent=1 // pred_check_branch
      %24 = sbr.rel (0) target = $region25
    $region24: #{transformer_forward.1} parent=1 // pred_region
      _
    $region25: #{transformer_forward.1} parent=1 // pred_fallthru
      _
    // Predicated region
    $region26: #{transformer_forward.1} parent=1 // pred_check
      _
    $region27: #{transformer_forward.1} parent=1 // pred_check_branch
      %26 = sbr.rel (0) target = $region29
    $region28: #{transformer_forward.1} parent=1 // pred_region
      _
    $region29: #{transformer_forward.1} parent=1 // pred_fallthru
      _
    %v27 = vlaneseq
    %v28 = vand.u32 %v27, 127
    %v29 = vld [vmem:[%s0] sm:$0xff]
    %v30 = vld [vmem:[%s0 + $0x8] sm:$0xff]
    %31 = vset.pattern.permute.xlu0 0
    %32 = vperm.xlu0 %31, %v29
    %v33 = vpop.permute.xlu0 %32
    %34 = vset.pattern.permute.xlu0 0
    %35 = vperm.xlu0 %34, %v30
    %v36 = vpop.permute.xlu0 %35
    %vm37 = vcmp.eq.s32.totalorder %v28, %v33
    %vm38 = vcmp.eq.s32.totalorder %v28, %v36
    %v39 = vsel %vm37, 1.0, 0.0
    %v40 = vsel %vm38, 1.0, 0.0
    %v41 = vld [vmem:[%s3] sm:$0xff]
    %v42 = vld [vmem:[%s3 + $0x8] sm:$0xff]
    %v43 = vld [vmem:[%s3 + $0x10] sm:$0xff]
    %v44 = vld [vmem:[%s3 + $0x18] sm:$0xff]
    %v45 = vld [vmem:[%s3 + $0x20] sm:$0xff]
    %v46 = vld [vmem:[%s3 + $0x28] sm:$0xff]
    %v47 = vld [vmem:[%s3 + $0x30] sm:$0xff]
    %v48 = vld [vmem:[%s3 + $0x38] sm:$0xff]
    %v49 = vld [vmem:[%s3 + $0x40] sm:$0xff]
    %v50 = vld [vmem:[%s3 + $0x48] sm:$0xff]
    %vm51 = vcmask 523264
    %v53 = vsel %vm51, %v39, 0
    %v56 = vsel %vm51, %v40, 0
    %58 = vmatpush.msra.mxu0 0.0
    %59 = vmatpush.msra.mxu0 0.0
    %60 = vmatpush.msra.mxu0 0.0
    %61 = vmatpush.msra.mxu0 0.0
    %62 = vmatpush.msra.mxu0 0.0
    %63 = vmatpush.msra.mxu0 0.0
    %64 = vmatpush.msra.mxu0 0.0
    %65 = vmatpush.msra.mxu0 0.0
    %66 = vmatpush.msra.mxu0 %v48
    %67 = vmatpush.msra.mxu0 %v47
    %68 = vmatpush.msra.mxu0 %v46
    %69 = vmatpush.msra.mxu0 %v45
    %70 = vmatpush.msra.mxu0 %v44
    %71 = vmatpush.msra.mxu0 %v43
    %72 = vmatpush.msra.mxu0 %v42
    %73 = vmatpush.msra.mxu0 %v41
    %74 = vmatmul.f32.gmra.mxu0 %v53
    %v75 = vpop.f32.mrf.mxu0
    %v76 = vadd.f32 %v49, %v75
    %77 = vmatmul.f32.gmra.mxu0 %v56
    %v78 = vpop.f32.mrf.mxu0
    %v79 = vadd.f32 %v50, %v78
    %80 = vdwg.mxu0
    %v81 = vld [vmem:[%s3 + $0x50] sm:$0x1]
    %v82 = vld [vmem:[%s3 + $0x51] sm:$0x1]
    %vm83 = vcmask 261120
    %v84 = vsel %vm83, %v76, 0.0
    %85 = vadd.xlane.f32.xlu0 %v84
    %v86 = vpop.xlane.xlu0 %85
    %v87 = vsel %vm83, %v79, 0.0
    %88 = vadd.xlane.f32.xlu0 %v87
    %v89 = vpop.xlane.xlu0 %88
    %v90 = vrcp.pop 32.0
    %v91 = vmul.f32 32.0, %v90
    %v92 = vsub.f32 1.0, %v91
    %v93 = vmul.f32 %v90, %v92
    %v94 = vadd.f32 %v90, %v93
    %vm95 = vweird.f32 %v90
    %v96 = vsel %vm95, %v90, %v94
    %v97 = vmul.f32 %v86, %v96
    %v98 = vmul.f32 %v89, %v96
    %v99 = vsub.f32 %v76, %v97
    %v100 = vsub.f32 %v79, %v98
    %v101 = vmul.f32 %v99, %v99
    %v102 = vmul.f32 %v100, %v100
    %v103 = vsel %vm83, %v101, 0.0
    %104 = vadd.xlane.f32.xlu0 %v103
    %v105 = vpop.xlane.xlu0 %104
    %v106 = vsel %vm83, %v102, 0.0
    %107 = vadd.xlane.f32.xlu0 %v106
    %v108 = vpop.xlane.xlu0 %107
    %v109 = vmul.f32 %v105, %v96
    %v110 = vmul.f32 %v108, %v96
    %v111 = vadd.f32 %v109, 1e-12
    %v112 = vadd.f32 %v110, 1e-12
    %v113 = vrsqrt.pop %v111
    %v114 = vmul.f32 %v113, %v111
    %v115 = vmul.f32 %v114, %v113
    %v116 = vmul.f32 0.5, %v115
    %v117 = vsub.f32 1.5, %v116
    %v118 = vmul.f32 %v113, %v117
    %vm119 = vweird.f32 %v111
    %vm120 = vweird.f32 %v113
    %vm121 = vmor %vm119, %vm120
    %v122 = vsel %vm121, %v113, %v118
    %v123 = vrsqrt.pop %v112
    %v124 = vmul.f32 %v123, %v112
    %v125 = vmul.f32 %v124, %v123
    %v126 = vmul.f32 0.5, %v125
    %v127 = vsub.f32 1.5, %v126
    %v128 = vmul.f32 %v123, %v127
    %vm129 = vweird.f32 %v112
    %vm130 = vweird.f32 %v123
    %vm131 = vmor %vm129, %vm130
    %v132 = vsel %vm131, %v123, %v128
    %v133 = vmul.f32 %v99, %v122
    %v134 = vmul.f32 %v100, %v132
    %v135 = vperm.slane %v81, 0
    %v136 = vmul.f32 %v133, %v135
    %v137 = vmul.f32 %v134, %v135
    %v138 = vperm.slane %v82, 0
    %v139 = vadd.f32 %v136, %v138
    %v140 = vadd.f32 %v137, %v138
    %v141 = vld [vmem:[%s1] sm:$0x1]
    %v142 = vcvt.s32.f32 %v141
    %v143 = vsub.f32 1.0, %v142
    %v144 = vmul.f32 %v143, -10000.0
    %v145 = vld [vmem:[%s2] sm:$0xff]
    %v146 = vld [vmem:[%s2 + $0x8] sm:$0xff]
    %v148 = vperm.slane %v144, 0
    %v150 = vadd.f32 %v145, %v148
    %v151 = vadd.f32 %v146, %v148
    %v152 = vld [vmem:[%s4] sm:$0xff]
    %v153 = vld [vmem:[%s4 + $0x8] sm:$0xff]
    %v154 = vld [vmem:[%s4 + $0x10] sm:$0xff]
    %v155 = vld [vmem:[%s4 + $0x18] sm:$0xff]
    %v156 = vld [vmem:[%s4 + $0x40] sm:$0x1]
    %v157 = vperm.slane %v156, 0
    %v159 = vsel %vm83, %v139, 0
    %v162 = vsel %vm83, %v140, 0
    %164 = vmatpush.msra.mxu0 0.0
    %165 = vmatpush.msra.mxu0 0.0
    %166 = vmatpush.msra.mxu0 0.0
    %167 = vmatpush.msra.mxu0 0.0
    %168 = vmatpush.msra.mxu0 0.0
    %169 = vmatpush.msra.mxu0 0.0
    %170 = vmatpush.msra.mxu0 0.0
    %171 = vmatpush.msra.mxu0 0.0
    %172 = vmatpush.msra.mxu0 0.0
    %173 = vmatpush.msra.mxu0 0.0
    %174 = vmatpush.msra.mxu0 0.0
    %175 = vmatpush.msra.mxu0 0.0
    %176 = vmatpush.msra.mxu0 %v155
    %177 = vmatpush.msra.mxu0 %v154
    %178 = vmatpush.msra.mxu0 %v153
    %179 = vmatpush.msra.mxu0 %v152
    %180 = vmatmul.f32.gmra.mxu0 %v159
    %v181 = vpop.f32.mrf.mxu0
    %v182 = vadd.f32 %v157, %v181
    %183 = vmatmul.f32.gmra.mxu0 %v162
    %v184 = vpop.f32.mrf.mxu0
    %v185 = vadd.f32 %v157, %v184
    %186 = vdwg.mxu0
    %189 = vrot.lane.b32.xlu0 %v182, 96
    %v190 = vpop.permute.xlu0 %189
    %191 = vrot.lane.b32.xlu0 %v185, 96
    %v192 = vpop.permute.xlu0 %191
    %vm193 = vcmask 64512
    %v194 = vsel %vm193, %v182, 0
    %v196 = vsel %vm193, %v185, 0
    %v198 = vsel %vm193, %v190, 0
    %v200 = vsel %vm193, %v192, 0
    %202 = vmatpush.xpose.msra.mxu0 0.0
    %203 = vmatpush.xpose.msra.mxu0 0.0
    %204 = vmatpush.xpose.msra.mxu0 0.0
    %205 = vmatpush.xpose.msra.mxu0 0.0
    %206 = vmatpush.xpose.msra.mxu0 0.0
    %207 = vmatpush.xpose.msra.mxu0 0.0
    %208 = vmatpush.xpose.msra.mxu0 0.0
    %209 = vmatpush.xpose.msra.mxu0 0.0
    %210 = vmatpush.xpose.msra.mxu0 0.0
    %211 = vmatpush.xpose.msra.mxu0 0.0
    %212 = vmatpush.xpose.msra.mxu0 0.0
    %213 = vmatpush.xpose.msra.mxu0 0.0
    %214 = vmatpush.xpose.msra.mxu0 0.0
    %215 = vmatpush.xpose.msra.mxu0 0.0
    %216 = vmatpush.xpose.msra.mxu0 %v200
    %217 = vmatpush.xpose.msra.mxu0 %v198
    %218 = vmatmul.f32.gmra.mxu0 %v194
    %v219 = vpop.f32.mrf.mxu0
    %v220 = vadd.f32 %v150, %v219
    %221 = vmatmul.f32.gmra.mxu0 %v196
    %v222 = vpop.f32.mrf.mxu0
    %v223 = vadd.f32 %v151, %v222
    %224 = vdwg.mxu0
    %vm225 = vcmask 130048
    %v226 = vsel %vm225, %v220, -inf
    %227 = vmax.xlane.f32.xlu0 %v226
    %v228 = vpop.xlane.xlu0 %227
    %v229 = vsel %vm225, %v223, -inf
    %230 = vmax.xlane.f32.xlu0 %v229
    %v231 = vpop.xlane.xlu0 %230
    %v232 = vsub.f32 %v220, %v228
    %v233 = vsub.f32 %v223, %v231
    %v234 = vmul.f32 %v232, 1.442695
    %v235 = vpow.pop %v234
    %v236 = vmul.f32 %v233, 1.442695
    %v237 = vpow.pop %v236
    %v238 = vsel %vm225, %v235, 0.0
    %239 = vadd.xlane.f32.xlu0 %v238
    %v240 = vpop.xlane.xlu0 %239
    %v241 = vsel %vm225, %v237, 0.0
    %242 = vadd.xlane.f32.xlu0 %v241
    %v243 = vpop.xlane.xlu0 %242
    %v244 = vrcp.pop %v240
    %v245 = vrcp.pop %v243
    %v246 = vmul.f32 %v235, %v244
    %v247 = vmul.f32 %v237, %v245
    %248 = vrot.lane.b32.xlu0 %v182, 64
    %v249 = vpop.permute.xlu0 %248
    %250 = vrot.lane.b32.xlu0 %v185, 64
    %v251 = vpop.permute.xlu0 %250
    %v255 = vsel %vm225, %v246, 0
    %v258 = vsel %vm225, %v247, 0
    %260 = vmatpush.msra.mxu0 0.0
    %261 = vmatpush.msra.mxu0 0.0
    %262 = vmatpush.msra.mxu0 0.0
    %263 = vmatpush.msra.mxu0 0.0
    %264 = vmatpush.msra.mxu0 0.0
    %265 = vmatpush.msra.mxu0 0.0
    %266 = vmatpush.msra.mxu0 0.0
    %267 = vmatpush.msra.mxu0 0.0
    %268 = vmatpush.msra.mxu0 0.0
    %269 = vmatpush.msra.mxu0 0.0
    %270 = vmatpush.msra.mxu0 0.0
    %271 = vmatpush.msra.mxu0 0.0
    %272 = vmatpush.msra.mxu0 0.0
    %273 = vmatpush.msra.mxu0 0.0
    %274 = vmatpush.msra.mxu0 %v251
    %275 = vmatpush.msra.mxu0 %v249
    %276 = vmatmul.f32.gmra.mxu0 %v255
    %v277 = vpop.f32.mrf.mxu0
    %v278 = vadd.f32 0.0, %v277
    %279 = vmatmul.f32.gmra.mxu0 %v258
    %v280 = vpop.f32.mrf.mxu0
    %v281 = vadd.f32 0.0, %v280
    %282 = vdwg.mxu0
    %283 = vrot.lane.b32.xlu0 %v182, 120
    %v284 = vpop.permute.xlu0 %283
    %285 = vrot.lane.b32.xlu0 %v185, 120
    %v286 = vpop.permute.xlu0 %285
    %287 = vrot.lane.b32.xlu0 %v182, 88
    %v288 = vpop.permute.xlu0 %287
    %289 = vrot.lane.b32.xlu0 %v185, 88
    %v290 = vpop.permute.xlu0 %289
    %v291 = vsel %vm193, %v284, 0
    %v293 = vsel %vm193, %v286, 0
    %v295 = vsel %vm193, %v288, 0
    %v297 = vsel %vm193, %v290, 0
    %299 = vmatpush.xpose.msra.mxu0 0.0
    %300 = vmatpush.xpose.msra.mxu0 0.0
    %301 = vmatpush.xpose.msra.mxu0 0.0
    %302 = vmatpush.xpose.msra.mxu0 0.0
    %303 = vmatpush.xpose.msra.mxu0 0.0
    %304 = vmatpush.xpose.msra.mxu0 0.0
    %305 = vmatpush.xpose.msra.mxu0 0.0
    %306 = vmatpush.xpose.msra.mxu0 0.0
    %307 = vmatpush.xpose.msra.mxu0 0.0
    %308 = vmatpush.xpose.msra.mxu0 0.0
    %309 = vmatpush.xpose.msra.mxu0 0.0
    %310 = vmatpush.xpose.msra.mxu0 0.0
    %311 = vmatpush.xpose.msra.mxu0 0.0
    %312 = vmatpush.xpose.msra.mxu0 0.0
    %313 = vmatpush.xpose.msra.mxu0 %v297
    %314 = vmatpush.xpose.msra.mxu0 %v295
    %315 = vmatmul.f32.gmra.mxu0 %v291
    %v316 = vpop.f32.mrf.mxu0
    %v317 = vadd.f32 %v150, %v316
    %318 = vmatmul.f32.gmra.mxu0 %v293
    %v319 = vpop.f32.mrf.mxu0
    %v320 = vadd.f32 %v151, %v319
    %321 = vdwg.mxu0
    %v322 = vsel %vm225, %v317, -inf
    %323 = vmax.xlane.f32.xlu0 %v322
    %v324 = vpop.xlane.xlu0 %323
    %v325 = vsel %vm225, %v320, -inf
    %326 = vmax.xlane.f32.xlu0 %v325
    %v327 = vpop.xlane.xlu0 %326
    %v328 = vsub.f32 %v317, %v324
    %v329 = vsub.f32 %v320, %v327
    %v330 = vmul.f32 %v328, 1.442695
    %v331 = vpow.pop %v330
    %v332 = vmul.f32 %v329, 1.442695
    %v333 = vpow.pop %v332
    %v334 = vsel %vm225, %v331, 0.0
    %335 = vadd.xlane.f32.xlu0 %v334
    %v336 = vpop.xlane.xlu0 %335
    %v337 = vsel %vm225, %v333, 0.0
    %338 = vadd.xlane.f32.xlu0 %v337
    %v339 = vpop.xlane.xlu0 %338
    %v340 = vrcp.pop %v336
    %v341 = vrcp.pop %v339
    %v342 = vmul.f32 %v331, %v340
    %v343 = vmul.f32 %v333, %v341
    %344 = vrot.lane.b32.xlu0 %v182, 56
    %v345 = vpop.permute.xlu0 %344
    %346 = vrot.lane.b32.xlu0 %v185, 56
    %v347 = vpop.permute.xlu0 %346
    %v351 = vsel %vm225, %v342, 0
    %v354 = vsel %vm225, %v343, 0
    %356 = vmatpush.msra.mxu0 0.0
    %357 = vmatpush.msra.mxu0 0.0
    %358 = vmatpush.msra.mxu0 0.0
    %359 = vmatpush.msra.mxu0 0.0
    %360 = vmatpush.msra.mxu0 0.0
    %361 = vmatpush.msra.mxu0 0.0
    %362 = vmatpush.msra.mxu0 0.0
    %363 = vmatpush.msra.mxu0 0.0
    %364 = vmatpush.msra.mxu0 0.0
    %365 = vmatpush.msra.mxu0 0.0
    %366 = vmatpush.msra.mxu0 0.0
    %367 = vmatpush.msra.mxu0 0.0
    %368 = vmatpush.msra.mxu0 0.0
    %369 = vmatpush.msra.mxu0 0.0
    %370 = vmatpush.msra.mxu0 %v347
    %371 = vmatpush.msra.mxu0 %v345
    %372 = vmatmul.f32.gmra.mxu0 %v351
    %v373 = vpop.f32.mrf.mxu0
    %v374 = vadd.f32 0.0, %v373
    %375 = vmatmul.f32.gmra.mxu0 %v354
    %v376 = vpop.f32.mrf.mxu0
    %v377 = vadd.f32 0.0, %v376
    %378 = vdwg.mxu0
    %379 = vrot.lane.b32.xlu0 %v182, 112
    %v380 = vpop.permute.xlu0 %379
    %381 = vrot.lane.b32.xlu0 %v185, 112
    %v382 = vpop.permute.xlu0 %381
    %383 = vrot.lane.b32.xlu0 %v182, 80
    %v384 = vpop.permute.xlu0 %383
    %385 = vrot.lane.b32.xlu0 %v185, 80
    %v386 = vpop.permute.xlu0 %385
    %v387 = vsel %vm193, %v380, 0
    %v389 = vsel %vm193, %v382, 0
    %v391 = vsel %vm193, %v384, 0
    %v393 = vsel %vm193, %v386, 0
    %395 = vmatpush.xpose.msra.mxu0 0.0
    %396 = vmatpush.xpose.msra.mxu0 0.0
    %397 = vmatpush.xpose.msra.mxu0 0.0
    %398 = vmatpush.xpose.msra.mxu0 0.0
    %399 = vmatpush.xpose.msra.mxu0 0.0
    %400 = vmatpush.xpose.msra.mxu0 0.0
    %401 = vmatpush.xpose.msra.mxu0 0.0
    %402 = vmatpush.xpose.msra.mxu0 0.0
    %403 = vmatpush.xpose.msra.mxu0 0.0
    %404 = vmatpush.xpose.msra.mxu0 0.0
    %405 = vmatpush.xpose.msra.mxu0 0.0
    %406 = vmatpush.xpose.msra.mxu0 0.0
    %407 = vmatpush.xpose.msra.mxu0 0.0
    %408 = vmatpush.xpose.msra.mxu0 0.0
    %409 = vmatpush.xpose.msra.mxu0 %v393
    %410 = vmatpush.xpose.msra.mxu0 %v391
    %411 = vmatmul.f32.gmra.mxu0 %v387
    %v412 = vpop.f32.mrf.mxu0
    %v413 = vadd.f32 %v150, %v412
    %414 = vmatmul.f32.gmra.mxu0 %v389
    %v415 = vpop.f32.mrf.mxu0
    %v416 = vadd.f32 %v151, %v415
    %417 = vdwg.mxu0
    %v418 = vsel %vm225, %v413, -inf
    %419 = vmax.xlane.f32.xlu0 %v418
    %v420 = vpop.xlane.xlu0 %419
    %v421 = vsel %vm225, %v416, -inf
    %422 = vmax.xlane.f32.xlu0 %v421
    %v423 = vpop.xlane.xlu0 %422
    %v424 = vsub.f32 %v413, %v420
    %v425 = vsub.f32 %v416, %v423
    %v426 = vmul.f32 %v424, 1.442695
    %v427 = vpow.pop %v426
    %v428 = vmul.f32 %v425, 1.442695
    %v429 = vpow.pop %v428
    %v430 = vsel %vm225, %v427, 0.0
    %431 = vadd.xlane.f32.xlu0 %v430
    %v432 = vpop.xlane.xlu0 %431
    %v433 = vsel %vm225, %v429, 0.0
    %434 = vadd.xlane.f32.xlu0 %v433
    %v435 = vpop.xlane.xlu0 %434
    %v436 = vrcp.pop %v432
    %v437 = vrcp.pop %v435
    %v438 = vmul.f32 %v427, %v436
    %v439 = vmul.f32 %v429, %v437
    %440 = vrot.lane.b32.xlu0 %v182, 48
    %v441 = vpop.permute.xlu0 %440
    %442 = vrot.lane.b32.xlu0 %v185, 48
    %v443 = vpop.permute.xlu0 %442
    %v447 = vsel %vm225, %v438, 0
    %v450 = vsel %vm225, %v439, 0
    %452 = vmatpush.msra.mxu0 0.0
    %453 = vmatpush.msra.mxu0 0.0
    %454 = vmatpush.msra.mxu0 0.0
    %455 = vmatpush.msra.mxu0 0.0
    %456 = vmatpush.msra.mxu0 0.0
    %457 = vmatpush.msra.mxu0 0.0
    %458 = vmatpush.msra.mxu0 0.0
    %459 = vmatpush.msra.mxu0 0.0
    %460 = vmatpush.msra.mxu0 0.0
    %461 = vmatpush.msra.mxu0 0.0
    %462 = vmatpush.msra.mxu0 0.0
    %463 = vmatpush.msra.mxu0 0.0
    %464 = vmatpush.msra.mxu0 0.0
    %465 = vmatpush.msra.mxu0 0.0
    %466 = vmatpush.msra.mxu0 %v443
    %467 = vmatpush.msra.mxu0 %v441
    %468 = vmatmul.f32.gmra.mxu0 %v447
    %v469 = vpop.f32.mrf.mxu0
    %v470 = vadd.f32 0.0, %v469
    %471 = vmatmul.f32.gmra.mxu0 %v450
    %v472 = vpop.f32.mrf.mxu0
    %v473 = vadd.f32 0.0, %v472
    %474 = vdwg.mxu0
    %475 = vrot.lane.b32.xlu0 %v182, 104
    %v476 = vpop.permute.xlu0 %475
    %477 = vrot.lane.b32.xlu0 %v185, 104
    %v478 = vpop.permute.xlu0 %477
    %479 = vrot.lane.b32.xlu0 %v182, 72
    %v480 = vpop.permute.xlu0 %479
    %481 = vrot.lane.b32.xlu0 %v185, 72
    %v482 = vpop.permute.xlu0 %481
    %v483 = vsel %vm193, %v476, 0
    %v485 = vsel %vm193, %v478, 0
    %v487 = vsel %vm193, %v480, 0
    %v489 = vsel %vm193, %v482, 0
    %491 = vmatpush.xpose.msra.mxu0 0.0
    %492 = vmatpush.xpose.msra.mxu0 0.0
    %493 = vmatpush.xpose.msra.mxu0 0.0
    %494 = vmatpush.xpose.msra.mxu0 0.0
    %495 = vmatpush.xpose.msra.mxu0 0.0
    %496 = vmatpush.xpose.msra.mxu0 0.0
    %497 = vmatpush.xpose.msra.mxu0 0.0
    %498 = vmatpush.xpose.msra.mxu0 0.0
    %499 = vmatpush.xpose.msra.mxu0 0.0
    %500 = vmatpush.xpose.msra.mxu0 0.0
    %501 = vmatpush.xpose.msra.mxu0 0.0
    %502 = vmatpush.xpose.msra.mxu0 0.0
    %503 = vmatpush.xpose.msra.mxu0 0.0
    %504 = vmatpush.xpose.msra.mxu0 0.0
    %505 = vmatpush.xpose.msra.mxu0 %v489
    %506 = vmatpush.xpose.msra.mxu0 %v487
    %507 = vmatmul.f32.gmra.mxu0 %v483
    %v508 = vpop.f32.mrf.mxu0
    %v509 = vadd.f32 %v150, %v508
    %510 = vmatmul.f32.gmra.mxu0 %v485
    %v511 = vpop.f32.mrf.mxu0
    %v512 = vadd.f32 %v151, %v511
    %513 = vdwg.mxu0
    %v514 = vsel %vm225, %v509, -inf
    %515 = vmax.xlane.f32.xlu0 %v514
    %v516 = vpop.xlane.xlu0 %515
    %v517 = vsel %vm225, %v512, -inf
    %518 = vmax.xlane.f32.xlu0 %v517
    %v519 = vpop.xlane.xlu0 %518
    %v520 = vsub.f32 %v509, %v516
    %v521 = vsub.f32 %v512, %v519
    %v522 = vmul.f32 %v520, 1.442695
    %v523 = vpow.pop %v522
    %v524 = vmul.f32 %v521, 1.442695
    %v525 = vpow.pop %v524
    %v526 = vsel %vm225, %v523, 0.0
    %527 = vadd.xlane.f32.xlu0 %v526
    %v528 = vpop.xlane.xlu0 %527
    %v529 = vsel %vm225, %v525, 0.0
    %530 = vadd.xlane.f32.xlu0 %v529
    %v531 = vpop.xlane.xlu0 %530
    %v532 = vrcp.pop %v528
    %v533 = vrcp.pop %v531
    %v534 = vmul.f32 %v523, %v532
    %v535 = vmul.f32 %v525, %v533
    %536 = vrot.lane.b32.xlu0 %v182, 40
    %v537 = vpop.permute.xlu0 %536
    %538 = vrot.lane.b32.xlu0 %v185, 40
    %v539 = vpop.permute.xlu0 %538
    %v543 = vsel %vm225, %v534, 0
    %v546 = vsel %vm225, %v535, 0
    %548 = vmatpush.msra.mxu0 0.0
    %549 = vmatpush.msra.mxu0 0.0
    %550 = vmatpush.msra.mxu0 0.0
    %551 = vmatpush.msra.mxu0 0.0
    %552 = vmatpush.msra.mxu0 0.0
    %553 = vmatpush.msra.mxu0 0.0
    %554 = vmatpush.msra.mxu0 0.0
    %555 = vmatpush.msra.mxu0 0.0
    %556 = vmatpush.msra.mxu0 0.0
    %557 = vmatpush.msra.mxu0 0.0
    %558 = vmatpush.msra.mxu0 0.0
    %559 = vmatpush.msra.mxu0 0.0
    %560 = vmatpush.msra.mxu0 0.0
    %561 = vmatpush.msra.mxu0 0.0
    %562 = vmatpush.msra.mxu0 %v539
    %563 = vmatpush.msra.mxu0 %v537
    %564 = vmatmul.f32.gmra.mxu0 %v543
    %v565 = vpop.f32.mrf.mxu0
    %v566 = vadd.f32 0.0, %v565
    %567 = vmatmul.f32.gmra.mxu0 %v546
    %v568 = vpop.f32.mrf.mxu0
    %v569 = vadd.f32 0.0, %v568
    %570 = vdwg.mxu0
    %573 = vrot.lane.b32.xlu0 %v374, 8
    %v574 = vpop.permute.xlu0 %573
    %575 = vrot.lane.b32.xlu0 %v377, 8
    %v576 = vpop.permute.xlu0 %575
    %581 = vrot.lane.b32.xlu0 %v470, 16
    %v582 = vpop.permute.xlu0 %581
    %583 = vrot.lane.b32.xlu0 %v473, 16
    %v584 = vpop.permute.xlu0 %583
    %589 = vrot.lane.b32.xlu0 %v566, 24
    %v590 = vpop.permute.xlu0 %589
    %591 = vrot.lane.b32.xlu0 %v569, 24
    %v592 = vpop.permute.xlu0 %591
    %v595 = vsel %vm193, %v278, %v574
    %v596 = vsel %vm193, %v281, %v576
    %v597 = vsel %vm225, %v595, %v582
    %v598 = vsel %vm225, %v596, %v584
    %vm599 = vcmask 195584
    %v600 = vsel %vm599, %v597, %v590
    %v601 = vsel %vm599, %v598, %v592
    %v602 = vld [vmem:[%s3 + $0x78] sm:$0xff]
    %v603 = vld [vmem:[%s3 + $0x80] sm:$0xff]
    %v604 = vld [vmem:[%s3 + $0x88] sm:$0xff]
    %v605 = vld [vmem:[%s3 + $0x90] sm:$0xff]
    %v606 = vld [vmem:[%s3 + $0x138] sm:$0x3f]
    %v607 = vperm.slane %v606, 0
    %v609 = vsel %vm83, %v600, 0
    %v612 = vsel %vm83, %v601, 0
    %614 = vmatpush.msra.mxu0 0.0
    %615 = vmatpush.msra.mxu0 0.0
    %616 = vmatpush.msra.mxu0 0.0
    %617 = vmatpush.msra.mxu0 0.0
    %618 = vmatpush.msra.mxu0 0.0
    %619 = vmatpush.msra.mxu0 0.0
    %620 = vmatpush.msra.mxu0 0.0
    %621 = vmatpush.msra.mxu0 0.0
    %622 = vmatpush.msra.mxu0 0.0
    %623 = vmatpush.msra.mxu0 0.0
    %624 = vmatpush.msra.mxu0 0.0
    %625 = vmatpush.msra.mxu0 0.0
    %626 = vmatpush.msra.mxu0 %v605
    %627 = vmatpush.msra.mxu0 %v604
    %628 = vmatpush.msra.mxu0 %v603
    %629 = vmatpush.msra.mxu0 %v602
    %630 = vmatmul.f32.gmra.mxu0 %v609
    %v631 = vpop.f32.mrf.mxu0
    %v632 = vadd.f32 %v607, %v631
    %633 = vmatmul.f32.gmra.mxu0 %v612
    %v634 = vpop.f32.mrf.mxu0
    %v635 = vadd.f32 %v607, %v634
    %636 = vdwg.mxu0
    %v637 = vadd.f32 %v632, %v139
    %v638 = vadd.f32 %v635, %v140
    %v639 = vsel %vm83, %v637, 0.0
    %640 = vadd.xlane.f32.xlu0 %v639
    %v641 = vpop.xlane.xlu0 %640
    %v642 = vsel %vm83, %v638, 0.0
    %643 = vadd.xlane.f32.xlu0 %v642
    %v644 = vpop.xlane.xlu0 %643
    %v645 = vmul.f32 %v641, %v96
    %v646 = vmul.f32 %v644, %v96
    %v647 = vsub.f32 %v637, %v645
    %v648 = vsub.f32 %v638, %v646
    %v649 = vmul.f32 %v647, %v647
    %v650 = vmul.f32 %v648, %v648
    %v651 = vsel %vm83, %v649, 0.0
    %652 = vadd.xlane.f32.xlu0 %v651
    %v653 = vpop.xlane.xlu0 %652
    %v654 = vsel %vm83, %v650, 0.0
    %655 = vadd.xlane.f32.xlu0 %v654
    %v656 = vpop.xlane.xlu0 %655
    %v657 = vmul.f32 %v653, %v96
    %v658 = vmul.f32 %v656, %v96
    %v659 = vadd.f32 %v657, 1e-12
    %v660 = vadd.f32 %v658, 1e-12
    %v661 = vrsqrt.pop %v659
    %v662 = vmul.f32 %v661, %v659
    %v663 = vmul.f32 %v662, %v661
    %v664 = vmul.f32 0.5, %v663
    %v665 = vsub.f32 1.5, %v664
    %v666 = vmul.f32 %v661, %v665
    %vm667 = vweird.f32 %v659
    %vm668 = vweird.f32 %v661
    %vm669 = vmor %vm667, %vm668
    %v670 = vsel %vm669, %v661, %v666
    %v671 = vrsqrt.pop %v660
    %v672 = vmul.f32 %v671, %v660
    %v673 = vmul.f32 %v672, %v671
    %v674 = vmul.f32 0.5, %v673
    %v675 = vsub.f32 1.5, %v674
    %v676 = vmul.f32 %v671, %v675
    %vm677 = vweird.f32 %v660
    %vm678 = vweird.f32 %v671
    %vm679 = vmor %vm677, %vm678
    %v680 = vsel %vm679, %v671, %v676
    %v681 = vmul.f32 %v647, %v670
    %v682 = vmul.f32 %v648, %v680
    %v683 = vperm.slane %v606, 1
    %v684 = vmul.f32 %v681, %v683
    %v685 = vmul.f32 %v682, %v683
    %v686 = vperm.slane %v606, 2
    %v687 = vadd.f32 %v684, %v686
    %v688 = vadd.f32 %v685, %v686
    %v689 = vld [vmem:[%s5] sm:$0xff]
    %v690 = vld [vmem:[%s5 + $0x8] sm:$0xff]
    %v691 = vld [vmem:[%s5 + $0x10] sm:$0xff]
    %v692 = vld [vmem:[%s5 + $0x18] sm:$0xff]
    %v693 = vld [vmem:[%s5 + $0x40] sm:$0x1]
    %v694 = vld [vmem:[%s3 + $0xb8] sm:$0xff]
    %v695 = vld [vmem:[%s3 + $0xc0] sm:$0xff]
    %v696 = vld [vmem:[%s3 + $0xc8] sm:$0xff]
    %v697 = vld [vmem:[%s3 + $0xd0] sm:$0xff]
    %v698 = vld [vmem:[%s3 + $0xd8] sm:$0xff]
    %v699 = vld [vmem:[%s3 + $0xe0] sm:$0xff]
    %v700 = vld [vmem:[%s3 + $0xe8] sm:$0xff]
    %v701 = vld [vmem:[%s3 + $0xf0] sm:$0xff]
    %v702 = vperm.slane %v693, 0
    %v704 = vsel %vm83, %v687, 0
    %v707 = vsel %vm83, %v688, 0
    %709 = vmatpush.msra.mxu0 0.0
    %710 = vmatpush.msra.mxu0 0.0
    %711 = vmatpush.msra.mxu0 0.0
    %712 = vmatpush.msra.mxu0 0.0
    %713 = vmatpush.msra.mxu0 0.0
    %714 = vmatpush.msra.mxu0 0.0
    %715 = vmatpush.msra.mxu0 0.0
    %716 = vmatpush.msra.mxu0 0.0
    %717 = vmatpush.msra.mxu0 0.0
    %718 = vmatpush.msra.mxu0 0.0
    %719 = vmatpush.msra.mxu0 0.0
    %720 = vmatpush.msra.mxu0 0.0
    %721 = vmatpush.msra.mxu0 %v692
    %722 = vmatpush.msra.mxu0 %v691
    %723 = vmatpush.msra.mxu0 %v690
    %724 = vmatpush.msra.mxu0 %v689
    %725 = vmatmul.f32.gmra.mxu0 %v704
    %v726 = vpop.f32.mrf.mxu0
    %v727 = vadd.f32 %v702, %v726
    %728 = vmatmul.f32.gmra.mxu0 %v707
    %v729 = vpop.f32.mrf.mxu0
    %v730 = vadd.f32 %v702, %v729
    %731 = vdwg.mxu0
    %v732 = vmul.f32 %v727, 0.70710677
    %v733 = vmul.f32 %v730, 0.70710677
    %vm734 = vcmp.ge.f32.partialorder %v732, 0.0
    %vm735 = vcmp.ge.f32.partialorder %v733, 0.0
    %v736 = vsel %vm734, 1.0, -1.0
    %v737 = vsel %vm735, 1.0, -1.0
    %v738 = vand.u32 2147483647, %v732
    %v739 = vand.u32 2147483647, %v733
    %v740 = vmul.f32 %v738, 0.3275911
    %v741 = vmul.f32 %v739, 0.3275911
    %v742 = vadd.f32 %v740, 1.0
    %v743 = vadd.f32 %v741, 1.0
    %v744 = vrcp.pop %v742
    %v745 = vmul.f32 %v742, %v744
    %v746 = vsub.f32 1.0, %v745
    %v747 = vmul.f32 %v744, %v746
    %v748 = vadd.f32 %v744, %v747
    %vm749 = vweird.f32 %v742
    %vm750 = vweird.f32 %v744
    %vm751 = vmor %vm749, %vm750
    %v752 = vsel %vm751, %v744, %v748
    %v753 = vand.u32 2147483647, %v742
    %vm754 = vcmp.eq.f32.partialorder %v753, 8.507059e+37
    %v755 = vand.u32 %v742, 2147483648
    %v756 = vor.u32 1.1754944e-38, %v755
    %v757 = vsel %vm754, %v756, %v752
    %v758 = vmul.f32 1.0, %v757
    %v759 = vrcp.pop %v743
    %v760 = vmul.f32 %v743, %v759
    %v761 = vsub.f32 1.0, %v760
    %v762 = vmul.f32 %v759, %v761
    %v763 = vadd.f32 %v759, %v762
    %vm764 = vweird.f32 %v743
    %vm765 = vweird.f32 %v759
    %vm766 = vmor %vm764, %vm765
    %v767 = vsel %vm766, %v759, %v763
    %v768 = vand.u32 2147483647, %v743
    %vm769 = vcmp.eq.f32.partialorder %v768, 8.507059e+37
    %v770 = vand.u32 %v743, 2147483648
    %v771 = vor.u32 1.1754944e-38, %v770
    %v772 = vsel %vm769, %v771, %v767
    %v773 = vmul.f32 1.0, %v772
    %v774 = vmul.f32 %v758, 1.0614054
    %v775 = vmul.f32 %v773, 1.0614054
    %v776 = vadd.f32 %v774, -1.4531521
    %v777 = vadd.f32 %v775, -1.4531521
    %v778 = vmul.f32 %v776, %v758
    %v779 = vmul.f32 %v777, %v773
    %v780 = vadd.f32 %v778, 1.4214138
    %v781 = vadd.f32 %v779, 1.4214138
    %v782 = vmul.f32 %v780, %v758
    %v783 = vmul.f32 %v781, %v773
    %v784 = vadd.f32 %v782, -0.28449672
    %v785 = vadd.f32 %v783, -0.28449672
    %v786 = vmul.f32 %v784, %v758
    %v787 = vmul.f32 %v785, %v773
    %v788 = vadd.f32 %v786, 0.2548296
    %v789 = vadd.f32 %v787, 0.2548296
    %v790 = vmul.f32 %v788, %v758
    %v791 = vmul.f32 %v789, %v773
    %v792 = vsub.f32 0.0, %v738
    %v793 = vsub.f32 0.0, %v739
    %v794 = vmul.f32 %v792, %v738
    %v795 = vmul.f32 %v793, %v739
    %v796 = vmul.f32 %v794, 1.442695
    %v797 = vpow.pop %v796
    %v798 = vmul.f32 %v795, 1.442695
    %v799 = vpow.pop %v798
    %v800 = vmul.f32 %v790, %v797
    %v801 = vmul.f32 %v791, %v799
    %v802 = vsub.f32 1.0, %v800
    %v803 = vsub.f32 1.0, %v801
    %v804 = vmul.f32 %v736, %v802
    %v805 = vmul.f32 %v737, %v803
    %v806 = vmul.f32 %v727, 0.5
    %v807 = vmul.f32 %v730, 0.5
    %v808 = vadd.f32 %v804, 1.0
    %v809 = vadd.f32 %v805, 1.0
    %v810 = vmul.f32 %v806, %v808
    %v811 = vmul.f32 %v807, %v809
    %v812 = vperm.slane %v606, 3
    %v814 = vsel %vm51, %v810, 0
    %v817 = vsel %vm51, %v811, 0
    %819 = vmatpush.msra.mxu0 0.0
    %820 = vmatpush.msra.mxu0 0.0
    %821 = vmatpush.msra.mxu0 0.0
    %822 = vmatpush.msra.mxu0 0.0
    %823 = vmatpush.msra.mxu0 0.0
    %824 = vmatpush.msra.mxu0 0.0
    %825 = vmatpush.msra.mxu0 0.0
    %826 = vmatpush.msra.mxu0 0.0
    %827 = vmatpush.msra.mxu0 %v701
    %828 = vmatpush.msra.mxu0 %v700
    %829 = vmatpush.msra.mxu0 %v699
    %830 = vmatpush.msra.mxu0 %v698
    %831 = vmatpush.msra.mxu0 %v697
    %832 = vmatpush.msra.mxu0 %v696
    %833 = vmatpush.msra.mxu0 %v695
    %834 = vmatpush.msra.mxu0 %v694
    %835 = vmatmul.f32.gmra.mxu0 %v814
    %v836 = vpop.f32.mrf.mxu0
    %v837 = vadd.f32 %v812, %v836
    %838 = vmatmul.f32.gmra.mxu0 %v817
    %v839 = vpop.f32.mrf.mxu0
    %v840 = vadd.f32 %v812, %v839
    %841 = vdwg.mxu0
    %v842 = vadd.f32 %v837, %v687
    %v843 = vadd.f32 %v840, %v688
    %v844 = vsel %vm83, %v842, 0.0
    %845 = vadd.xlane.f32.xlu0 %v844
    %v846 = vpop.xlane.xlu0 %845
    %v847 = vsel %vm83, %v843, 0.0
    %848 = vadd.xlane.f32.xlu0 %v847
    %v849 = vpop.xlane.xlu0 %848
    %v850 = vmul.f32 %v846, %v96
    %v851 = vmul.f32 %v849, %v96
    %v852 = vsub.f32 %v842, %v850
    %v853 = vsub.f32 %v843, %v851
    %v854 = vmul.f32 %v852, %v852
    %v855 = vmul.f32 %v853, %v853
    %v856 = vsel %vm83, %v854, 0.0
    %857 = vadd.xlane.f32.xlu0 %v856
    %v858 = vpop.xlane.xlu0 %857
    %v859 = vsel %vm83, %v855, 0.0
    %860 = vadd.xlane.f32.xlu0 %v859
    %v861 = vpop.xlane.xlu0 %860
    %v862 = vmul.f32 %v858, %v96
    %v863 = vmul.f32 %v861, %v96
    %v864 = vadd.f32 %v862, 1e-12
    %v865 = vadd.f32 %v863, 1e-12
    %v866 = vrsqrt.pop %v864
    %v867 = vmul.f32 %v866, %v864
    %v868 = vmul.f32 %v867, %v866
    %v869 = vmul.f32 0.5, %v868
    %v870 = vsub.f32 1.5, %v869
    %v871 = vmul.f32 %v866, %v870
    %vm872 = vweird.f32 %v864
    %vm873 = vweird.f32 %v866
    %vm874 = vmor %vm872, %vm873
    %v875 = vsel %vm874, %v866, %v871
    %v876 = vrsqrt.pop %v865
    %v877 = vmul.f32 %v876, %v865
    %v878 = vmul.f32 %v877, %v876
    %v879 = vmul.f32 0.5, %v878
    %v880 = vsub.f32 1.5, %v879
    %v881 = vmul.f32 %v876, %v880
    %vm882 = vweird.f32 %v865
    %vm883 = vweird.f32 %v876
    %vm884 = vmor %vm882, %vm883
    %v885 = vsel %vm884, %v876, %v881
    %v886 = vmul.f32 %v852, %v875
    %v887 = vmul.f32 %v853, %v885
    %v888 = vperm.slane %v606, 4
    %v889 = vmul.f32 %v886, %v888
    %v890 = vmul.f32 %v887, %v888
    %v891 = vperm.slane %v606, 5
    %v892 = vadd.f32 %v889, %v891
    %v893 = vadd.f32 %v890, %v891
    %v894 = vld [vmem:[%s4 + $0x20] sm:$0xff]
    %v895 = vld [vmem:[%s4 + $0x28] sm:$0xff]
    %v896 = vld [vmem:[%s4 + $0x30] sm:$0xff]
    %v897 = vld [vmem:[%s4 + $0x38] sm:$0xff]
    %v898 = vld [vmem:[%s4 + $0x41] sm:$0x1]
    %v899 = vperm.slane %v898, 0
    %v901 = vsel %vm83, %v892, 0
    %v904 = vsel %vm83, %v893, 0
    %906 = vmatpush.msra.mxu0 0.0
    %907 = vmatpush.msra.mxu0 0.0
    %908 = vmatpush.msra.mxu0 0.0
    %909 = vmatpush.msra.mxu0 0.0
    %910 = vmatpush.msra.mxu0 0.0
    %911 = vmatpush.msra.mxu0 0.0
    %912 = vmatpush.msra.mxu0 0.0
    %913 = vmatpush.msra.mxu0 0.0
    %914 = vmatpush.msra.mxu0 0.0
    %915 = vmatpush.msra.mxu0 0.0
    %916 = vmatpush.msra.mxu0 0.0
    %917 = vmatpush.msra.mxu0 0.0
    %918 = vmatpush.msra.mxu0 %v897
    %919 = vmatpush.msra.mxu0 %v896
    %920 = vmatpush.msra.mxu0 %v895
    %921 = vmatpush.msra.mxu0 %v894
    %922 = vmatmul.f32.gmra.mxu0 %v901
    %v923 = vpop.f32.mrf.mxu0
    %v924 = vadd.f32 %v899, %v923
    %925 = vmatmul.f32.gmra.mxu0 %v904
    %v926 = vpop.f32.mrf.mxu0
    %v927 = vadd.f32 %v899, %v926
    %928 = vdwg.mxu0
    %931 = vrot.lane.b32.xlu0 %v924, 96
    %v932 = vpop.permute.xlu0 %931
    %933 = vrot.lane.b32.xlu0 %v927, 96
    %v934 = vpop.permute.xlu0 %933
    %v935 = vsel %vm193, %v924, 0
    %v937 = vsel %vm193, %v927, 0
    %v939 = vsel %vm193, %v932, 0
    %v941 = vsel %vm193, %v934, 0
    %943 = vmatpush.xpose.msra.mxu0 0.0
    %944 = vmatpush.xpose.msra.mxu0 0.0
    %945 = vmatpush.xpose.msra.mxu0 0.0
    %946 = vmatpush.xpose.msra.mxu0 0.0
    %947 = vmatpush.xpose.msra.mxu0 0.0
    %948 = vmatpush.xpose.msra.mxu0 0.0
    %949 = vmatpush.xpose.msra.mxu0 0.0
    %950 = vmatpush.xpose.msra.mxu0 0.0
    %951 = vmatpush.xpose.msra.mxu0 0.0
    %952 = vmatpush.xpose.msra.mxu0 0.0
    %953 = vmatpush.xpose.msra.mxu0 0.0
    %954 = vmatpush.xpose.msra.mxu0 0.0
    %955 = vmatpush.xpose.msra.mxu0 0.0
    %956 = vmatpush.xpose.msra.mxu0 0.0
    %957 = vmatpush.xpose.msra.mxu0 %v941
    %958 = vmatpush.xpose.msra.mxu0 %v939
    %959 = vmatmul.f32.gmra.mxu0 %v935
    %v960 = vpop.f32.mrf.mxu0
    %v961 = vadd.f32 %v150, %v960
    %962 = vmatmul.f32.gmra.mxu0 %v937
    %v963 = vpop.f32.mrf.mxu0
    %v964 = vadd.f32 %v151, %v963
    %965 = vdwg.mxu0
    %v966 = vsel %vm225, %v961, -inf
    %967 = vmax.xlane.f32.xlu0 %v966
    %v968 = vpop.xlane.xlu0 %967
    %v969 = vsel %vm225, %v964, -inf
    %970 = vmax.xlane.f32.xlu0 %v969
    %v971 = vpop.xlane.xlu0 %970
    %v972 = vsub.f32 %v961, %v968
    %v973 = vsub.f32 %v964, %v971
    %v974 = vmul.f32 %v972, 1.442695
    %v975 = vpow.pop %v974
    %v976 = vmul.f32 %v973, 1.442695
    %v977 = vpow.pop %v976
    %v978 = vsel %vm225, %v975, 0.0
    %979 = vadd.xlane.f32.xlu0 %v978
    %v980 = vpop.xlane.xlu0 %979
    %v981 = vsel %vm225, %v977, 0.0
    %982 = vadd.xlane.f32.xlu0 %v981
    %v983 = vpop.xlane.xlu0 %982
    %v984 = vrcp.pop %v980
    %v985 = vrcp.pop %v983
    %v986 = vmul.f32 %v975, %v984
    %v987 = vmul.f32 %v977, %v985
    %988 = vrot.lane.b32.xlu0 %v924, 64
    %v989 = vpop.permute.xlu0 %988
    %990 = vrot.lane.b32.xlu0 %v927, 64
    %v991 = vpop.permute.xlu0 %990
    %v995 = vsel %vm225, %v986, 0
    %v998 = vsel %vm225, %v987, 0
    %1000 = vmatpush.msra.mxu0 0.0
    %1001 = vmatpush.msra.mxu0 0.0
    %1002 = vmatpush.msra.mxu0 0.0
    %1003 = vmatpush.msra.mxu0 0.0
    %1004 = vmatpush.msra.mxu0 0.0
    %1005 = vmatpush.msra.mxu0 0.0
    %1006 = vmatpush.msra.mxu0 0.0
    %1007 = vmatpush.msra.mxu0 0.0
    %1008 = vmatpush.msra.mxu0 0.0
    %1009 = vmatpush.msra.mxu0 0.0
    %1010 = vmatpush.msra.mxu0 0.0
    %1011 = vmatpush.msra.mxu0 0.0
    %1012 = vmatpush.msra.mxu0 0.0
    %1013 = vmatpush.msra.mxu0 0.0
    %1014 = vmatpush.msra.mxu0 %v991
    %1015 = vmatpush.msra.mxu0 %v989
    %1016 = vmatmul.f32.gmra.mxu0 %v995
    %v1017 = vpop.f32.mrf.mxu0
    %v1018 = vadd.f32 0.0, %v1017
    %1019 = vmatmul.f32.gmra.mxu0 %v998
    %v1020 = vpop.f32.mrf.mxu0
    %v1021 = vadd.f32 0.0, %v1020
    %1022 = vdwg.mxu0
    %1023 = vrot.lane.b32.xlu0 %v924, 120
    %v1024 = vpop.permute.xlu0 %1023
    %1025 = vrot.lane.b32.xlu0 %v927, 120
    %v1026 = vpop.permute.xlu0 %1025
    %1027 = vrot.lane.b32.xlu0 %v924, 88
    %v1028 = vpop.permute.xlu0 %1027
    %1029 = vrot.lane.b32.xlu0 %v927, 88
    %v1030 = vpop.permute.xlu0 %1029
    %v1031 = vsel %vm193, %v1024, 0
    %v1033 = vsel %vm193, %v1026, 0
    %v1035 = vsel %vm193, %v1028, 0
    %v1037 = vsel %vm193, %v1030, 0
    %1039 = vmatpush.xpose.msra.mxu0 0.0
    %1040 = vmatpush.xpose.msra.mxu0 0.0
    %1041 = vmatpush.xpose.msra.mxu0 0.0
    %1042 = vmatpush.xpose.msra.mxu0 0.0
    %1043 = vmatpush.xpose.msra.mxu0 0.0
    %1044 = vmatpush.xpose.msra.mxu0 0.0
    %1045 = vmatpush.xpose.msra.mxu0 0.0
    %1046 = vmatpush.xpose.msra.mxu0 0.0
    %1047 = vmatpush.xpose.msra.mxu0 0.0
    %1048 = vmatpush.xpose.msra.mxu0 0.0
    %1049 = vmatpush.xpose.msra.mxu0 0.0
    %1050 = vmatpush.xpose.msra.mxu0 0.0
    %1051 = vmatpush.xpose.msra.mxu0 0.0
    %1052 = vmatpush.xpose.msra.mxu0 0.0
    %1053 = vmatpush.xpose.msra.mxu0 %v1037
    %1054 = vmatpush.xpose.msra.mxu0 %v1035
    %1055 = vmatmul.f32.gmra.mxu0 %v1031
    %v1056 = vpop.f32.mrf.mxu0
    %v1057 = vadd.f32 %v150, %v1056
    %1058 = vmatmul.f32.gmra.mxu0 %v1033
    %v1059 = vpop.f32.mrf.mxu0
    %v1060 = vadd.f32 %v151, %v1059
    %1061 = vdwg.mxu0
    %v1062 = vsel %vm225, %v1057, -inf
    %1063 = vmax.xlane.f32.xlu0 %v1062
    %v1064 = vpop.xlane.xlu0 %1063
    %v1065 = vsel %vm225, %v1060, -inf
    %1066 = vmax.xlane.f32.xlu0 %v1065
    %v1067 = vpop.xlane.xlu0 %1066
    %v1068 = vsub.f32 %v1057, %v1064
    %v1069 = vsub.f32 %v1060, %v1067
    %v1070 = vmul.f32 %v1068, 1.442695
    %v1071 = vpow.pop %v1070
    %v1072 = vmul.f32 %v1069, 1.442695
    %v1073 = vpow.pop %v1072
    %v1074 = vsel %vm225, %v1071, 0.0
    %1075 = vadd.xlane.f32.xlu0 %v1074
    %v1076 = vpop.xlane.xlu0 %1075
    %v1077 = vsel %vm225, %v1073, 0.0
    %1078 = vadd.xlane.f32.xlu0 %v1077
    %v1079 = vpop.xlane.xlu0 %1078
    %v1080 = vrcp.pop %v1076
    %v1081 = vrcp.pop %v1079
    %v1082 = vmul.f32 %v1071, %v1080
    %v1083 = vmul.f32 %v1073, %v1081
    %1084 = vrot.lane.b32.xlu0 %v924, 56
    %v1085 = vpop.permute.xlu0 %1084
    %1086 = vrot.lane.b32.xlu0 %v927, 56
    %v1087 = vpop.permute.xlu0 %1086
    %v1091 = vsel %vm225, %v1082, 0
    %v1094 = vsel %vm225, %v1083, 0
    %1096 = vmatpush.msra.mxu0 0.0
    %1097 = vmatpush.msra.mxu0 0.0
    %1098 = vmatpush.msra.mxu0 0.0
    %1099 = vmatpush.msra.mxu0 0.0
    %1100 = vmatpush.msra.mxu0 0.0
    %1101 = vmatpush.msra.mxu0 0.0
    %1102 = vmatpush.msra.mxu0 0.0
    %1103 = vmatpush.msra.mxu0 0.0
    %1104 = vmatpush.msra.mxu0 0.0
    %1105 = vmatpush.msra.mxu0 0.0
    %1106 = vmatpush.msra.mxu0 0.0
    %1107 = vmatpush.msra.mxu0 0.0
    %1108 = vmatpush.msra.mxu0 0.0
    %1109 = vmatpush.msra.mxu0 0.0
    %1110 = vmatpush.msra.mxu0 %v1087
    %1111 = vmatpush.msra.mxu0 %v1085
    %1112 = vmatmul.f32.gmra.mxu0 %v1091
    %v1113 = vpop.f32.mrf.mxu0
    %v1114 = vadd.f32 0.0, %v1113
    %1115 = vmatmul.f32.gmra.mxu0 %v1094
    %v1116 = vpop.f32.mrf.mxu0
    %v1117 = vadd.f32 0.0, %v1116
    %1118 = vdwg.mxu0
    %1119 = vrot.lane.b32.xlu0 %v924, 112
    %v1120 = vpop.permute.xlu0 %1119
    %1121 = vrot.lane.b32.xlu0 %v927, 112
    %v1122 = vpop.permute.xlu0 %1121
    %1123 = vrot.lane.b32.xlu0 %v924, 80
    %v1124 = vpop.permute.xlu0 %1123
    %1125 = vrot.lane.b32.xlu0 %v927, 80
    %v1126 = vpop.permute.xlu0 %1125
    %v1127 = vsel %vm193, %v1120, 0
    %v1129 = vsel %vm193, %v1122, 0
    %v1131 = vsel %vm193, %v1124, 0
    %v1133 = vsel %vm193, %v1126, 0
    %1135 = vmatpush.xpose.msra.mxu0 0.0
    %1136 = vmatpush.xpose.msra.mxu0 0.0
    %1137 = vmatpush.xpose.msra.mxu0 0.0
    %1138 = vmatpush.xpose.msra.mxu0 0.0
    %1139 = vmatpush.xpose.msra.mxu0 0.0
    %1140 = vmatpush.xpose.msra.mxu0 0.0
    %1141 = vmatpush.xpose.msra.mxu0 0.0
    %1142 = vmatpush.xpose.msra.mxu0 0.0
    %1143 = vmatpush.xpose.msra.mxu0 0.0
    %1144 = vmatpush.xpose.msra.mxu0 0.0
    %1145 = vmatpush.xpose.msra.mxu0 0.0
    %1146 = vmatpush.xpose.msra.mxu0 0.0
    %1147 = vmatpush.xpose.msra.mxu0 0.0
    %1148 = vmatpush.xpose.msra.mxu0 0.0
    %1149 = vmatpush.xpose.msra.mxu0 %v1133
    %1150 = vmatpush.xpose.msra.mxu0 %v1131
    %1151 = vmatmul.f32.gmra.mxu0 %v1127
    %v1152 = vpop.f32.mrf.mxu0
    %v1153 = vadd.f32 %v150, %v1152
    %1154 = vmatmul.f32.gmra.mxu0 %v1129
    %v1155 = vpop.f32.mrf.mxu0
    %v1156 = vadd.f32 %v151, %v1155
    %1157 = vdwg.mxu0
    %v1158 = vsel %vm225, %v1153, -inf
    %1159 = vmax.xlane.f32.xlu0 %v1158
    %v1160 = vpop.xlane.xlu0 %1159
    %v1161 = vsel %vm225, %v1156, -inf
    %1162 = vmax.xlane.f32.xlu0 %v1161
    %v1163 = vpop.xlane.xlu0 %1162
    %v1164 = vsub.f32 %v1153, %v1160
    %v1165 = vsub.f32 %v1156, %v1163
    %v1166 = vmul.f32 %v1164, 1.442695
    %v1167 = vpow.pop %v1166
    %v1168 = vmul.f32 %v1165, 1.442695
    %v1169 = vpow.pop %v1168
    %v1170 = vsel %vm225, %v1167, 0.0
    %1171 = vadd.xlane.f32.xlu0 %v1170
    %v1172 = vpop.xlane.xlu0 %1171
    %v1173 = vsel %vm225, %v1169, 0.0
    %1174 = vadd.xlane.f32.xlu0 %v1173
    %v1175 = vpop.xlane.xlu0 %1174
    %v1176 = vrcp.pop %v1172
    %v1177 = vrcp.pop %v1175
    %v1178 = vmul.f32 %v1167, %v1176
    %v1179 = vmul.f32 %v1169, %v1177
    %1180 = vrot.lane.b32.xlu0 %v924, 48
    %v1181 = vpop.permute.xlu0 %1180
    %1182 = vrot.lane.b32.xlu0 %v927, 48
    %v1183 = vpop.permute.xlu0 %1182
    %v1187 = vsel %vm225, %v1178, 0
    %v1190 = vsel %vm225, %v1179, 0
    %1192 = vmatpush.msra.mxu0 0.0
    %1193 = vmatpush.msra.mxu0 0.0
    %1194 = vmatpush.msra.mxu0 0.0
    %1195 = vmatpush.msra.mxu0 0.0
    %1196 = vmatpush.msra.mxu0 0.0
    %1197 = vmatpush.msra.mxu0 0.0
    %1198 = vmatpush.msra.mxu0 0.0
    %1199 = vmatpush.msra.mxu0 0.0
    %1200 = vmatpush.msra.mxu0 0.0
    %1201 = vmatpush.msra.mxu0 0.0
    %1202 = vmatpush.msra.mxu0 0.0
    %1203 = vmatpush.msra.mxu0 0.0
    %1204 = vmatpush.msra.mxu0 0.0
    %1205 = vmatpush.msra.mxu0 0.0
    %1206 = vmatpush.msra.mxu0 %v1183
    %1207 = vmatpush.msra.mxu0 %v1181
    %1208 = vmatmul.f32.gmra.mxu0 %v1187
    %v1209 = vpop.f32.mrf.mxu0
    %v1210 = vadd.f32 0.0, %v1209
    %1211 = vmatmul.f32.gmra.mxu0 %v1190
    %v1212 = vpop.f32.mrf.mxu0
    %v1213 = vadd.f32 0.0, %v1212
    %1214 = vdwg.mxu0
    %1215 = vrot.lane.b32.xlu0 %v924, 104
    %v1216 = vpop.permute.xlu0 %1215
    %1217 = vrot.lane.b32.xlu0 %v927, 104
    %v1218 = vpop.permute.xlu0 %1217
    %1219 = vrot.lane.b32.xlu0 %v924, 72
    %v1220 = vpop.permute.xlu0 %1219
    %1221 = vrot.lane.b32.xlu0 %v927, 72
    %v1222 = vpop.permute.xlu0 %1221
    %v1223 = vsel %vm193, %v1216, 0
    %v1225 = vsel %vm193, %v1218, 0
    %v1227 = vsel %vm193, %v1220, 0
    %v1229 = vsel %vm193, %v1222, 0
    %1231 = vmatpush.xpose.msra.mxu0 0.0
    %1232 = vmatpush.xpose.msra.mxu0 0.0
    %1233 = vmatpush.xpose.msra.mxu0 0.0
    %1234 = vmatpush.xpose.msra.mxu0 0.0
    %1235 = vmatpush.xpose.msra.mxu0 0.0
    %1236 = vmatpush.xpose.msra.mxu0 0.0
    %1237 = vmatpush.xpose.msra.mxu0 0.0
    %1238 = vmatpush.xpose.msra.mxu0 0.0
    %1239 = vmatpush.xpose.msra.mxu0 0.0
    %1240 = vmatpush.xpose.msra.mxu0 0.0
    %1241 = vmatpush.xpose.msra.mxu0 0.0
    %1242 = vmatpush.xpose.msra.mxu0 0.0
    %1243 = vmatpush.xpose.msra.mxu0 0.0
    %1244 = vmatpush.xpose.msra.mxu0 0.0
    %1245 = vmatpush.xpose.msra.mxu0 %v1229
    %1246 = vmatpush.xpose.msra.mxu0 %v1227
    %1247 = vmatmul.f32.gmra.mxu0 %v1223
    %v1248 = vpop.f32.mrf.mxu0
    %v1249 = vadd.f32 %v150, %v1248
    %1250 = vmatmul.f32.gmra.mxu0 %v1225
    %v1251 = vpop.f32.mrf.mxu0
    %v1252 = vadd.f32 %v151, %v1251
    %1253 = vdwg.mxu0
    %v1254 = vsel %vm225, %v1249, -inf
    %1255 = vmax.xlane.f32.xlu0 %v1254
    %v1256 = vpop.xlane.xlu0 %1255
    %v1257 = vsel %vm225, %v1252, -inf
    %1258 = vmax.xlane.f32.xlu0 %v1257
    %v1259 = vpop.xlane.xlu0 %1258
    %v1260 = vsub.f32 %v1249, %v1256
    %v1261 = vsub.f32 %v1252, %v1259
    %v1262 = vmul.f32 %v1260, 1.442695
    %v1263 = vpow.pop %v1262
    %v1264 = vmul.f32 %v1261, 1.442695
    %v1265 = vpow.pop %v1264
    %v1266 = vsel %vm225, %v1263, 0.0
    %1267 = vadd.xlane.f32.xlu0 %v1266
    %v1268 = vpop.xlane.xlu0 %1267
    %v1269 = vsel %vm225, %v1265, 0.0
    %1270 = vadd.xlane.f32.xlu0 %v1269
    %v1271 = vpop.xlane.xlu0 %1270
    %v1272 = vrcp.pop %v1268
    %v1273 = vrcp.pop %v1271
    %v1274 = vmul.f32 %v1263, %v1272
    %v1275 = vmul.f32 %v1265, %v1273
    %1276 = vrot.lane.b32.xlu0 %v924, 40
    %v1277 = vpop.permute.xlu0 %1276
    %1278 = vrot.lane.b32.xlu0 %v927, 40
    %v1279 = vpop.permute.xlu0 %1278
    %v1283 = vsel %vm225, %v1274, 0
    %v1286 = vsel %vm225, %v1275, 0
    %1288 = vmatpush.msra.mxu0 0.0
    %1289 = vmatpush.msra.mxu0 0.0
    %1290 = vmatpush.msra.mxu0 0.0
    %1291 = vmatpush.msra.mxu0 0.0
    %1292 = vmatpush.msra.mxu0 0.0
    %1293 = vmatpush.msra.mxu0 0.0
    %1294 = vmatpush.msra.mxu0 0.0
    %1295 = vmatpush.msra.mxu0 0.0
    %1296 = vmatpush.msra.mxu0 0.0
    %1297 = vmatpush.msra.mxu0 0.0
    %1298 = vmatpush.msra.mxu0 0.0
    %1299 = vmatpush.msra.mxu0 0.0
    %1300 = vmatpush.msra.mxu0 0.0
    %1301 = vmatpush.msra.mxu0 0.0
    %1302 = vmatpush.msra.mxu0 %v1279
    %1303 = vmatpush.msra.mxu0 %v1277
    %1304 = vmatmul.f32.gmra.mxu0 %v1283
    %v1305 = vpop.f32.mrf.mxu0
    %v1306 = vadd.f32 0.0, %v1305
    %1307 = vmatmul.f32.gmra.mxu0 %v1286
    %v1308 = vpop.f32.mrf.mxu0
    %v1309 = vadd.f32 0.0, %v1308
    %1310 = vdwg.mxu0
    %1313 = vrot.lane.b32.xlu0 %v1114, 8
    %v1314 = vpop.permute.xlu0 %1313
    %1315 = vrot.lane.b32.xlu0 %v1117, 8
    %v1316 = vpop.permute.xlu0 %1315
    %1321 = vrot.lane.b32.xlu0 %v1210, 16
    %v1322 = vpop.permute.xlu0 %1321
    %1323 = vrot.lane.b32.xlu0 %v1213, 16
    %v1324 = vpop.permute.xlu0 %1323
    %1329 = vrot.lane.b32.xlu0 %v1306, 24
    %v1330 = vpop.permute.xlu0 %1329
    %1331 = vrot.lane.b32.xlu0 %v1309, 24
    %v1332 = vpop.permute.xlu0 %1331
    %v1335 = vsel %vm193, %v1018, %v1314
    %v1336 = vsel %vm193, %v1021, %v1316
    %v1337 = vsel %vm225, %v1335, %v1322
    %v1338 = vsel %vm225, %v1336, %v1324
    %v1339 = vsel %vm599, %v1337, %v1330
    %v1340 = vsel %vm599, %v1338, %v1332
    %v1341 = vld [vmem:[%s3 + $0x98] sm:$0xff]
    %v1342 = vld [vmem:[%s3 + $0xa0] sm:$0xff]
    %v1343 = vld [vmem:[%s3 + $0xa8] sm:$0xff]
    %v1344 = vld [vmem:[%s3 + $0xb0] sm:$0xff]
    %v1345 = vld [vmem:[%s3 + $0x13e] sm:$0x3f]
    %v1346 = vperm.slane %v1345, 0
    %v1348 = vsel %vm83, %v1339, 0
    %v1351 = vsel %vm83, %v1340, 0
    %1353 = vmatpush.msra.mxu0 0.0
    %1354 = vmatpush.msra.mxu0 0.0
    %1355 = vmatpush.msra.mxu0 0.0
    %1356 = vmatpush.msra.mxu0 0.0
    %1357 = vmatpush.msra.mxu0 0.0
    %1358 = vmatpush.msra.mxu0 0.0
    %1359 = vmatpush.msra.mxu0 0.0
    %1360 = vmatpush.msra.mxu0 0.0
    %1361 = vmatpush.msra.mxu0 0.0
    %1362 = vmatpush.msra.mxu0 0.0
    %1363 = vmatpush.msra.mxu0 0.0
    %1364 = vmatpush.msra.mxu0 0.0
    %1365 = vmatpush.msra.mxu0 %v1344
    %1366 = vmatpush.msra.mxu0 %v1343
    %1367 = vmatpush.msra.mxu0 %v1342
    %1368 = vmatpush.msra.mxu0 %v1341
    %1369 = vmatmul.f32.gmra.mxu0 %v1348
    %v1370 = vpop.f32.mrf.mxu0
    %v1371 = vadd.f32 %v1346, %v1370
    %1372 = vmatmul.f32.gmra.mxu0 %v1351
    %v1373 = vpop.f32.mrf.mxu0
    %v1374 = vadd.f32 %v1346, %v1373
    %1375 = vdwg.mxu0
    %v1376 = vadd.f32 %v1371, %v892
    %v1377 = vadd.f32 %v1374, %v893
    %v1378 = vsel %vm83, %v1376, 0.0
    %1379 = vadd.xlane.f32.xlu0 %v1378
    %v1380 = vpop.xlane.xlu0 %1379
    %v1381 = vsel %vm83, %v1377, 0.0
    %1382 = vadd.xlane.f32.xlu0 %v1381
    %v1383 = vpop.xlane.xlu0 %1382
    %v1384 = vmul.f32 %v1380, %v96
    %v1385 = vmul.f32 %v1383, %v96
    %v1386 = vsub.f32 %v1376, %v1384
    %v1387 = vsub.f32 %v1377, %v1385
    %v1388 = vmul.f32 %v1386, %v1386
    %v1389 = vmul.f32 %v1387, %v1387
    %v1390 = vsel %vm83, %v1388, 0.0
    %1391 = vadd.xlane.f32.xlu0 %v1390
    %v1392 = vpop.xlane.xlu0 %1391
    %v1393 = vsel %vm83, %v1389, 0.0
    %1394 = vadd.xlane.f32.xlu0 %v1393
    %v1395 = vpop.xlane.xlu0 %1394
    %v1396 = vmul.f32 %v1392, %v96
    %v1397 = vmul.f32 %v1395, %v96
    %v1398 = vadd.f32 %v1396, 1e-12
    %v1399 = vadd.f32 %v1397, 1e-12
    %v1400 = vrsqrt.pop %v1398
    %v1401 = vmul.f32 %v1400, %v1398
    %v1402 = vmul.f32 %v1401, %v1400
    %v1403 = vmul.f32 0.5, %v1402
    %v1404 = vsub.f32 1.5, %v1403
    %v1405 = vmul.f32 %v1400, %v1404
    %vm1406 = vweird.f32 %v1398
    %vm1407 = vweird.f32 %v1400
    %vm1408 = vmor %vm1406, %vm1407
    %v1409 = vsel %vm1408, %v1400, %v1405
    %v1410 = vrsqrt.pop %v1399
    %v1411 = vmul.f32 %v1410, %v1399
    %v1412 = vmul.f32 %v1411, %v1410
    %v1413 = vmul.f32 0.5, %v1412
    %v1414 = vsub.f32 1.5, %v1413
    %v1415 = vmul.f32 %v1410, %v1414
    %vm1416 = vweird.f32 %v1399
    %vm1417 = vweird.f32 %v1410
    %vm1418 = vmor %vm1416, %vm1417
    %v1419 = vsel %vm1418, %v1410, %v1415
    %v1420 = vmul.f32 %v1386, %v1409
    %v1421 = vmul.f32 %v1387, %v1419
    %v1422 = vperm.slane %v1345, 1
    %v1423 = vmul.f32 %v1420, %v1422
    %v1424 = vmul.f32 %v1421, %v1422
    %v1425 = vperm.slane %v1345, 2
    %v1426 = vadd.f32 %v1423, %v1425
    %v1427 = vadd.f32 %v1424, %v1425
    %v1428 = vld [vmem:[%s5 + $0x20] sm:$0xff]
    %v1429 = vld [vmem:[%s5 + $0x28] sm:$0xff]
    %v1430 = vld [vmem:[%s5 + $0x30] sm:$0xff]
    %v1431 = vld [vmem:[%s5 + $0x38] sm:$0xff]
    %v1432 = vld [vmem:[%s5 + $0x41] sm:$0x1]
    %v1433 = vld [vmem:[%s3 + $0xf8] sm:$0xff]
    %v1434 = vld [vmem:[%s3 + $0x100] sm:$0xff]
    %v1435 = vld [vmem:[%s3 + $0x108] sm:$0xff]
    %v1436 = vld [vmem:[%s3 + $0x110] sm:$0xff]
    %v1437 = vld [vmem:[%s3 + $0x118] sm:$0xff]
    %v1438 = vld [vmem:[%s3 + $0x120] sm:$0xff]
    %v1439 = vld [vmem:[%s3 + $0x128] sm:$0xff]
    %v1440 = vld [vmem:[%s3 + $0x130] sm:$0xff]
    %v1441 = vperm.slane %v1432, 0
    %v1443 = vsel %vm83, %v1426, 0
    %v1446 = vsel %vm83, %v1427, 0
    %1448 = vmatpush.msra.mxu0 0.0
    %1449 = vmatpush.msra.mxu0 0.0
    %1450 = vmatpush.msra.mxu0 0.0
    %1451 = vmatpush.msra.mxu0 0.0
    %1452 = vmatpush.msra.mxu0 0.0
    %1453 = vmatpush.msra.mxu0 0.0
    %1454 = vmatpush.msra.mxu0 0.0
    %1455 = vmatpush.msra.mxu0 0.0
    %1456 = vmatpush.msra.mxu0 0.0
    %1457 = vmatpush.msra.mxu0 0.0
    %1458 = vmatpush.msra.mxu0 0.0
    %1459 = vmatpush.msra.mxu0 0.0
    %1460 = vmatpush.msra.mxu0 %v1431
    %1461 = vmatpush.msra.mxu0 %v1430
    %1462 = vmatpush.msra.mxu0 %v1429
    %1463 = vmatpush.msra.mxu0 %v1428
    %1464 = vmatmul.f32.gmra.mxu0 %v1443
    %v1465 = vpop.f32.mrf.mxu0
    %v1466 = vadd.f32 %v1441, %v1465
    %1467 = vmatmul.f32.gmra.mxu0 %v1446
    %v1468 = vpop.f32.mrf.mxu0
    %v1469 = vadd.f32 %v1441, %v1468
    %1470 = vdwg.mxu0
    %v1471 = vmul.f32 %v1466, 0.70710677
    %v1472 = vmul.f32 %v1469, 0.70710677
    %vm1473 = vcmp.ge.f32.partialorder %v1471, 0.0
    %vm1474 = vcmp.ge.f32.partialorder %v1472, 0.0
    %v1475 = vsel %vm1473, 1.0, -1.0
    %v1476 = vsel %vm1474, 1.0, -1.0
    %v1477 = vand.u32 2147483647, %v1471
    %v1478 = vand.u32 2147483647, %v1472
    %v1479 = vmul.f32 %v1477, 0.3275911
    %v1480 = vmul.f32 %v1478, 0.3275911
    %v1481 = vadd.f32 %v1479, 1.0
    %v1482 = vadd.f32 %v1480, 1.0
    %v1483 = vrcp.pop %v1481
    %v1484 = vmul.f32 %v1481, %v1483
    %v1485 = vsub.f32 1.0, %v1484
    %v1486 = vmul.f32 %v1483, %v1485
    %v1487 = vadd.f32 %v1483, %v1486
    %vm1488 = vweird.f32 %v1481
    %vm1489 = vweird.f32 %v1483
    %vm1490 = vmor %vm1488, %vm1489
    %v1491 = vsel %vm1490, %v1483, %v1487
    %v1492 = vand.u32 2147483647, %v1481
    %vm1493 = vcmp.eq.f32.partialorder %v1492, 8.507059e+37
    %v1494 = vand.u32 %v1481, 2147483648
    %v1495 = vor.u32 1.1754944e-38, %v1494
    %v1496 = vsel %vm1493, %v1495, %v1491
    %v1497 = vmul.f32 1.0, %v1496
    %v1498 = vrcp.pop %v1482
    %v1499 = vmul.f32 %v1482, %v1498
    %v1500 = vsub.f32 1.0, %v1499
    %v1501 = vmul.f32 %v1498, %v1500
    %v1502 = vadd.f32 %v1498, %v1501
    %vm1503 = vweird.f32 %v1482
    %vm1504 = vweird.f32 %v1498
    %vm1505 = vmor %vm1503, %vm1504
    %v1506 = vsel %vm1505, %v1498, %v1502
    %v1507 = vand.u32 2147483647, %v1482
    %vm1508 = vcmp.eq.f32.partialorder %v1507, 8.507059e+37
    %v1509 = vand.u32 %v1482, 2147483648
    %v1510 = vor.u32 1.1754944e-38, %v1509
    %v1511 = vsel %vm1508, %v1510, %v1506
    %v1512 = vmul.f32 1.0, %v1511
    %v1513 = vmul.f32 %v1497, 1.0614054
    %v1514 = vmul.f32 %v1512, 1.0614054
    %v1515 = vadd.f32 %v1513, -1.4531521
    %v1516 = vadd.f32 %v1514, -1.4531521
    %v1517 = vmul.f32 %v1515, %v1497
    %v1518 = vmul.f32 %v1516, %v1512
    %v1519 = vadd.f32 %v1517, 1.4214138
    %v1520 = vadd.f32 %v1518, 1.4214138
    %v1521 = vmul.f32 %v1519, %v1497
    %v1522 = vmul.f32 %v1520, %v1512
    %v1523 = vadd.f32 %v1521, -0.28449672
    %v1524 = vadd.f32 %v1522, -0.28449672
    %v1525 = vmul.f32 %v1523, %v1497
    %v1526 = vmul.f32 %v1524, %v1512
    %v1527 = vadd.f32 %v1525, 0.2548296
    %v1528 = vadd.f32 %v1526, 0.2548296
    %v1529 = vmul.f32 %v1527, %v1497
    %v1530 = vmul.f32 %v1528, %v1512
    %v1531 = vsub.f32 0.0, %v1477
    %v1532 = vsub.f32 0.0, %v1478
    %v1533 = vmul.f32 %v1531, %v1477
    %v1534 = vmul.f32 %v1532, %v1478
    %v1535 = vmul.f32 %v1533, 1.442695
    %v1536 = vpow.pop %v1535
    %v1537 = vmul.f32 %v1534, 1.442695
    %v1538 = vpow.pop %v1537
    %v1539 = vmul.f32 %v1529, %v1536
    %v1540 = vmul.f32 %v1530, %v1538
    %v1541 = vsub.f32 1.0, %v1539
    %v1542 = vsub.f32 1.0, %v1540
    %v1543 = vmul.f32 %v1475, %v1541
    %v1544 = vmul.f32 %v1476, %v1542
    %v1545 = vmul.f32 %v1466, 0.5
    %v1546 = vmul.f32 %v1469, 0.5
    %v1547 = vadd.f32 %v1543, 1.0
    %v1548 = vadd.f32 %v1544, 1.0
    %v1549 = vmul.f32 %v1545, %v1547
    %v1550 = vmul.f32 %v1546, %v1548
    %v1551 = vperm.slane %v1345, 3
    %v1553 = vsel %vm51, %v1549, 0
    %v1556 = vsel %vm51, %v1550, 0
    %1558 = vmatpush.msra.mxu0 0.0
    %1559 = vmatpush.msra.mxu0 0.0
    %1560 = vmatpush.msra.mxu0 0.0
    %1561 = vmatpush.msra.mxu0 0.0
    %1562 = vmatpush.msra.mxu0 0.0
    %1563 = vmatpush.msra.mxu0 0.0
    %1564 = vmatpush.msra.mxu0 0.0
    %1565 = vmatpush.msra.mxu0 0.0
    %1566 = vmatpush.msra.mxu0 %v1440
    %1567 = vmatpush.msra.mxu0 %v1439
    %1568 = vmatpush.msra.mxu0 %v1438
    %1569 = vmatpush.msra.mxu0 %v1437
    %1570 = vmatpush.msra.mxu0 %v1436
    %1571 = vmatpush.msra.mxu0 %v1435
    %1572 = vmatpush.msra.mxu0 %v1434
    %1573 = vmatpush.msra.mxu0 %v1433
    %1574 = vmatmul.f32.gmra.mxu0 %v1553
    %v1575 = vpop.f32.mrf.mxu0
    %v1576 = vadd.f32 %v1551, %v1575
    %1577 = vmatmul.f32.gmra.mxu0 %v1556
    %v1578 = vpop.f32.mrf.mxu0
    %v1579 = vadd.f32 %v1551, %v1578
    %1580 = vdwg.mxu0
    %v1581 = vadd.f32 %v1576, %v1426
    %v1582 = vadd.f32 %v1579, %v1427
    %v1583 = vsel %vm83, %v1581, 0.0
    %1584 = vadd.xlane.f32.xlu0 %v1583
    %v1585 = vpop.xlane.xlu0 %1584
    %v1586 = vsel %vm83, %v1582, 0.0
    %1587 = vadd.xlane.f32.xlu0 %v1586
    %v1588 = vpop.xlane.xlu0 %1587
    %v1589 = vmul.f32 %v1585, %v96
    %v1590 = vmul.f32 %v1588, %v96
    %v1591 = vsub.f32 %v1581, %v1589
    %v1592 = vsub.f32 %v1582, %v1590
    %v1593 = vmul.f32 %v1591, %v1591
    %v1594 = vmul.f32 %v1592, %v1592
    %v1595 = vsel %vm83, %v1593, 0.0
    %1596 = vadd.xlane.f32.xlu0 %v1595
    %v1597 = vpop.xlane.xlu0 %1596
    %v1598 = vsel %vm83, %v1594, 0.0
    %1599 = vadd.xlane.f32.xlu0 %v1598
    %v1600 = vpop.xlane.xlu0 %1599
    %v1601 = vmul.f32 %v1597, %v96
    %v1602 = vmul.f32 %v1600, %v96
    %v1603 = vadd.f32 %v1601, 1e-12
    %v1604 = vadd.f32 %v1602, 1e-12
    %v1605 = vrsqrt.pop %v1603
    %v1606 = vmul.f32 %v1605, %v1603
    %v1607 = vmul.f32 %v1606, %v1605
    %v1608 = vmul.f32 0.5, %v1607
    %v1609 = vsub.f32 1.5, %v1608
    %v1610 = vmul.f32 %v1605, %v1609
    %vm1611 = vweird.f32 %v1603
    %vm1612 = vweird.f32 %v1605
    %vm1613 = vmor %vm1611, %vm1612
    %v1614 = vsel %vm1613, %v1605, %v1610
    %v1615 = vrsqrt.pop %v1604
    %v1616 = vmul.f32 %v1615, %v1604
    %v1617 = vmul.f32 %v1616, %v1615
    %v1618 = vmul.f32 0.5, %v1617
    %v1619 = vsub.f32 1.5, %v1618
    %v1620 = vmul.f32 %v1615, %v1619
    %vm1621 = vweird.f32 %v1604
    %vm1622 = vweird.f32 %v1615
    %vm1623 = vmor %vm1621, %vm1622
    %v1624 = vsel %vm1623, %v1615, %v1620
    %v1625 = vmul.f32 %v1591, %v1614
    %v1626 = vmul.f32 %v1592, %v1624
    %v1627 = vperm.slane %v1345, 4
    %v1628 = vmul.f32 %v1625, %v1627
    %v1629 = vmul.f32 %v1626, %v1627
    %v1630 = vperm.slane %v1345, 5
    %v1631 = vadd.f32 %v1628, %v1630
    %v1632 = vadd.f32 %v1629, %v1630
    %v1634 = vrot.slane %v1632, 7
    %vm1636 = vcmask 1040384
    %v1637 = vsel %vm1636, %v1631, %v1634
    %v1638 = vld [vmem:[%s3 + $0x58] sm:$0xff]
    %v1639 = vld [vmem:[%s3 + $0x60] sm:$0xff]
    %v1640 = vld [vmem:[%s3 + $0x68] sm:$0xff]
    %v1641 = vld [vmem:[%s3 + $0x70] sm:$0xff]
    %v1642 = vld [vmem:[%s3 + $0x52] sm:$0x1]
    %v1643 = vperm.slane %v1642, 0
    %v1645 = vsel %vm83, %v1637, 0
    %1647 = vmatpush.msra.mxu0 0.0
    %1648 = vmatpush.msra.mxu0 0.0
    %1649 = vmatpush.msra.mxu0 0.0
    %1650 = vmatpush.msra.mxu0 0.0
    %1651 = vmatpush.msra.mxu0 0.0
    %1652 = vmatpush.msra.mxu0 0.0
    %1653 = vmatpush.msra.mxu0 0.0
    %1654 = vmatpush.msra.mxu0 0.0
    %1655 = vmatpush.msra.mxu0 0.0
    %1656 = vmatpush.msra.mxu0 0.0
    %1657 = vmatpush.msra.mxu0 0.0
    %1658 = vmatpush.msra.mxu0 0.0
    %1659 = vmatpush.msra.mxu0 %v1641
    %1660 = vmatpush.msra.mxu0 %v1640
    %1661 = vmatpush.msra.mxu0 %v1639
    %1662 = vmatpush.msra.mxu0 %v1638
    %1663 = vmatmul.f32.gmra.mxu0 %v1645
    %v1664 = vpop.f32.mrf.mxu0
    %v1665 = vadd.f32 %v1643, %v1664
    %1666 = vdwg.mxu0
    %v1667 = vtanh.pop %v1665
    %v1668 = vld [vmem:[%s6] sm:$0xff]
    %v1669 = vld [vmem:[%s6 + $0x8] sm:$0xff]
    %v1670 = vld [vmem:[%s6 + $0x10] sm:$0xff]
    %v1671 = vld [vmem:[%s6 + $0x18] sm:$0xff]
    %v1672 = vld [vmem:[%s6 + $0x20] sm:$0x1]
    %v1673 = vperm.slane %v1672, 0
    %v1675 = vsel %vm83, %v1667, 0
    %1677 = vmatpush.msra.mxu0 0.0
    %1678 = vmatpush.msra.mxu0 0.0
    %1679 = vmatpush.msra.mxu0 0.0
    %1680 = vmatpush.msra.mxu0 0.0
    %1681 = vmatpush.msra.mxu0 0.0
    %1682 = vmatpush.msra.mxu0 0.0
    %1683 = vmatpush.msra.mxu0 0.0
    %1684 = vmatpush.msra.mxu0 0.0
    %1685 = vmatpush.msra.mxu0 0.0
    %1686 = vmatpush.msra.mxu0 0.0
    %1687 = vmatpush.msra.mxu0 0.0
    %1688 = vmatpush.msra.mxu0 0.0
    %1689 = vmatpush.msra.mxu0 %v1671
    %1690 = vmatpush.msra.mxu0 %v1670
    %1691 = vmatpush.msra.mxu0 %v1669
    %1692 = vmatpush.msra.mxu0 %v1668
    %1693 = vmatmul.f32.gmra.mxu0 %v1675
    %v1694 = vpop.f32.mrf.mxu0
    %v1695 = vadd.f32 %v1673, %v1694
    %1696 = vdwg.mxu0
    %vm1697 = vcmask 9216
    %1698 = vst.msk [vmem:[#allocation2] sm:$0x3] %vm1697, %v1695
    // Predicated region
    $region30: #{transformer_forward.1} parent=1 // pred_check
      _
    $region31: #{transformer_forward.1} parent=1 // pred_check_branch
      %1700 = sbr.rel (0) target = $region33
    $region32: #{transformer_forward.1} parent=1 // pred_region
      %1702 = vsyncadd [#allocation3], 0
      %s1704 = sshll.u32 [#allocation2], 4
      %s1705 = int_to_ptr.vmem [resolvable:$true] %s1704
      %s1706 = sshll.u32 %s7, 4
      %s1707 = int_to_ptr.hbm [resolvable:$true] %s1706
      %1709 = dma.vmem_to_hbm [thread:$0]  %s1705, 32, %s1707, [#allocation3]
    $region33: #{transformer_forward.1} parent=1 // pred_fallthru
      _
    // Predicated region
    $region34: #{transformer_forward.1} parent=1 // pred_check
      _
    $region35: #{transformer_forward.1} parent=1 // pred_check_branch
      %1711 = sbr.rel (0) target = $region37
    $region36: #{transformer_forward.1} parent=1 // pred_region
      %1713 = dma.done [#allocation3], 32
    $region37: #{transformer_forward.1} parent=1 // pred_fallthru
      _
    %1714 = vsyncpa [#allocation3], 1

</llo_original>
